<compile_context>
chip_gen: v6e
topology: v6e:2x2x1
jax: 0.10.0
libtpu: 0.0.40
codegen_flags: <defaults>
</compile_context>

<pallas_src>
import numpy as np
import jax
import jax.numpy as jnp
from jax.experimental import pallas as pl
from jax.experimental.pallas import tpu as pltpu


COUT = 32     # every conv layer has 32 output channels
KSIZE = 3
SUBLANE = 16  # bf16 sublane tile; all row offsets / sizes are multiples of this


def _round_up(n, m):
    return ((n + m - 1) // m) * m


def _conv_dims(H0, W0):
    """Spatial sizes after each of the 4 VALID convs with strides (2,1,1,1)."""
    H1, W1 = (H0 - KSIZE) // 2 + 1, (W0 - KSIZE) // 2 + 1
    return [(H1 - 2 * i, W1 - 2 * i) for i in range(4)]


def _pick_block_batch(n):
    """Samples per grid step: as large as possible (<=8) with an even grid (v7x)."""
    best = 1
    for b in range(1, min(n, 8) + 1):
        if n % b == 0 and (n // b) >= 2 and (n // b) % 2 == 0:
            best = b
    return best


# ------------------------- fused encoder kernel -----------------------------

def _build_encoder_kernel(Wv):
    """Fused 4-layer conv kernel; activations in 'virtual width Wv' row layout."""

    def kernel(x_ref, w1_ref, w2_ref, w3_ref, w4_ref, b_ref, o_ref):
        # ---- layer 1: a single dot, K = 9*Cin (im2col done in the wrapper) ----
        h = jnp.dot(x_ref[...], w1_ref[...],
                    preferred_element_type=jnp.float32)
        h = jnp.maximum(h + b_ref[0:1, :], 0.0)            # f32 (B*Rpad, 32)

        # ---- layers 2..4: stride-1 3x3 convs as 3 dots of K = 96 each --------
        # kw taps: XLU sublane rolls + lane concat (96-lane bf16 operand);
        # kh taps: sublane-aligned slab offsets 0, Wv, 2*Wv.
        for l, w_ref in enumerate((w2_ref, w3_ref, w4_ref)):
            r = h.shape[0]
            cat = jnp.concatenate(
                [h,
                 pltpu.roll(h, r - 1, axis=0),              # row j -> h[j+1]
                 pltpu.roll(h, r - 2, axis=0)],             # row j -> h[j+2]
                axis=-1).astype(jnp.bfloat16)               # (r, 96) bf16
            m = r - 2 * Wv                                  # rows emitted this layer
            acc = jnp.dot(cat[0:m, :], w_ref[0],
                          preferred_element_type=jnp.float32)
            acc = acc + jnp.dot(cat[Wv:Wv + m, :], w_ref[1],
                                preferred_element_type=jnp.float32)
            acc = acc + jnp.dot(cat[2 * Wv:2 * Wv + m, :], w_ref[2],
                                preferred_element_type=jnp.float32)
            h = jnp.maximum(acc + b_ref[l + 1:l + 2, :], 0.0)   # f32 (m, 32)

        # ---- single contiguous, sublane-aligned store of the final features --
        o_ref[0:h.shape[0], :] = h

    return kernel


def _im2col_layer1(obs_nchw, H1, W1, Wv, Rpad):
    """Stride-2 3x3 im2col laid out at 'virtual width' Wv.
    Returns (N*Rpad, 9*Cin); garbage columns/rows are zero-filled."""
    N, C0, H0, W0 = obs_nchw.shape
    x = jnp.transpose(obs_nchw, (0, 2, 3, 1))               # NHWC
    taps = []
    for kh in range(KSIZE):
        for kw in range(KSIZE):
            taps.append(x[:, kh:kh + 2 * H1 - 1:2, kw:kw + 2 * W1 - 1:2, :])
    cols = jnp.concatenate(taps, axis=-1)                   # (N, H1, W1, 9*C0)
    cols = jnp.pad(cols, ((0, 0), (0, 0), (0, Wv - W1), (0, 0)))
    cols = cols.reshape(N, H1 * Wv, KSIZE * KSIZE * C0)
    if H1 * Wv < Rpad:
        cols = jnp.pad(cols, ((0, 0), (0, Rpad - H1 * Wv), (0, 0)))
    elif H1 * Wv > Rpad:
        cols = cols[:, :Rpad, :]
    return cols.reshape(N * Rpad, KSIZE * KSIZE * C0)


def encoder_forward(obs_nchw, fused_params):
    """obs_nchw: (N, C, H, W) float32 in [0, 255].
    Returns (N, 32*H4*W4) flattened in PyTorch NCHW order (== h.view(N, -1))."""
    w1m, w2m, w3m, w4m, bmat = fused_params
    N, C0, H0, W0 = obs_nchw.shape
    dims = _conv_dims(H0, W0)
    (H1, W1), (H4, W4) = dims[0], dims[3]
    assert H4 >= 1 and W4 >= 1, "input too small for four 3x3 VALID convs"

    # virtual-width layout parameters
    Wv = _round_up(W1, SUBLANE)          # row pitch (multiple of 16 keeps every
    Rpad = Wv * H1                       # slab slice bf16-sublane aligned)
    T = [Wv * (h - 1) + w for (h, w) in dims]
    # every layer's valid rows fit in one Rpad sample region, and the rows
    # emitted per layer (shrinking by 2*Wv each layer) still cover them
    for l in range(4):
        assert Rpad >= T[l] + 2 * Wv * l, (Rpad, T, Wv)
    assert Rpad - 6 * Wv == Wv * H4      # wrapper reads exactly the rows written

    B = _pick_block_batch(N)
    G = N // B

    x_cols = _im2col_layer1(obs_nchw, H1, W1, Wv, Rpad).astype(jnp.bfloat16)

    out2d = pl.pallas_call(
        _build_encoder_kernel(Wv),
        out_shape=jax.ShapeDtypeStruct((N * Rpad, COUT), jnp.float32),
        grid_spec=pltpu.PrefetchScalarGridSpec(
            num_scalar_prefetch=0,
            grid=(G,),
            in_specs=[
                pl.BlockSpec((B * Rpad, KSIZE * KSIZE * C0), lambda g: (g, 0)),
                pl.BlockSpec(w1m.shape, lambda g: (0, 0)),
                pl.BlockSpec(w2m.shape, lambda g: (0, 0, 0)),
                pl.BlockSpec(w3m.shape, lambda g: (0, 0, 0)),
                pl.BlockSpec(w4m.shape, lambda g: (0, 0, 0)),
                pl.BlockSpec(bmat.shape, lambda g: (0, 0)),
            ],
            out_specs=pl.BlockSpec((B * Rpad, COUT), lambda g: (g, 0)),
        ),
        compiler_params=pltpu.CompilerParams(
            dimension_semantics=("parallel",)),
    )(x_cols, w1m, w2m, w3m, w4m, bmat)

    # strip the garbage virtual-width columns (free reshape/slice) and flatten
    # in PyTorch NCHW order, exactly like h.view(N, -1).
    feat = out2d.reshape(N, Rpad, COUT)[:, :Wv * H4, :]
    feat = feat.reshape(N, H4, Wv, COUT)[:, :, :W4, :]       # NHWC, valid cols
    return jnp.transpose(feat, (0, 3, 1, 2)).reshape(N, COUT * H4 * W4)


# ----------------------------- parameter init -------------------------------

def orthogonal_init(key, rows, cols, gain):
    """Mimic torch.nn.init.orthogonal_ on a (rows, cols) matrix."""
    a = jax.random.normal(key, (max(rows, cols), min(rows, cols)), jnp.float32)
    q, r = jnp.linalg.qr(a)
    q = q * jnp.sign(jnp.diagonal(r))[None, :]
    if rows < cols:
        q = q.T
    return (gain * q[:rows, :cols]).astype(jnp.float32)


def make_encoder_params(key, in_channels):
    """PyTorch-equivalent init: orthogonal(gain=sqrt(2)) conv weights, zero bias."""
    gain = float(np.sqrt(2.0))  # calculate_gain('relu')
    layers = []
    cin = in_channels
    for s in (2, 1, 1, 1):
        key, sub = jax.random.split(key)
        w_flat = orthogonal_init(sub, COUT, cin * KSIZE * KSIZE, gain)
        w_oihw = w_flat.reshape(COUT, cin, KSIZE, KSIZE)      # PyTorch layout
        w_hwio = jnp.transpose(w_oihw, (2, 3, 1, 0))          # HWIO for conv
        b = jnp.zeros((COUT,), jnp.float32)
        layers.append((w_hwio, b, s))
        cin = COUT
    return layers


def prepare_fused_params(params):
    """Pack weights for the fused kernel.
      * layer 1: fold (x/255 - 0.5) into weight/bias (exact) and flatten to
        (9*Cin, 32), matching the wrapper im2col lane order (kh, kw, ci).
      * layers 2-4: HWIO (3,3,32,32) -> (kh, kw*32 + ci, co) = (3, 96, 32) so
        dot `kh` consumes the lane-concatenated [h[j], h[j+1], h[j+2]] operand.
    MXU operands are stored in bf16; biases stay f32."""
    (w1, b1, _), (w2, b2, _), (w3, b3, _), (w4, b4, _) = params
    c0 = w1.shape[2]
    w1m = (w1 / 255.0).reshape(KSIZE * KSIZE * c0, COUT)       # scale fold
    b1f = b1 - 0.5 * jnp.sum(w1, axis=(0, 1, 2))               # shift fold
    pack = lambda w: w.reshape(KSIZE, KSIZE * COUT, COUT)
    bmat = jnp.stack([b1f, b2, b3, b4], axis=0).astype(jnp.float32)   # (4, 32)
    return (w1m.astype(jnp.bfloat16),
            pack(w2).astype(jnp.bfloat16),
            pack(w3).astype(jnp.bfloat16),
            pack(w4).astype(jnp.bfloat16),
            bmat)


# ----------------------------- reference -------------------------------------

def encoder_reference(obs_nchw, params):
    x = obs_nchw / 255.0 - 0.5
    x = jnp.transpose(x, (0, 2, 3, 1))
    for (w, b, s) in params:
        x = jax.lax.conv_general_dilated(
            x, w, (s, s), 'VALID',
            dimension_numbers=('NHWC', 'HWIO', 'NHWC'),
            precision=jax.lax.Precision.HIGHEST)
        x = jnp.maximum(x + b[None, None, None, :], 0.0)
    x = jnp.transpose(x, (0, 3, 1, 2))
    return x.reshape(x.shape[0], -1)


# --------------------------------- main --------------------------------------

if __name__ == "__main__":
    key = jax.random.PRNGKey(0)
    k_obs, k_par = jax.random.split(key)

    # small synthetic obs: batch=2, channels=4, spatial=24 (NCHW, like PyTorch)
    N, C, H, W = 2, 4, 24, 24
    obs = jax.random.uniform(k_obs, (N, C, H, W), jnp.float32, 0.0, 255.0)

    params = make_encoder_params(k_par, C)
    fused = prepare_fused_params(params)

    out = jax.block_until_ready(encoder_forward(obs, fused))
    ref = jax.block_until_ready(encoder_reference(obs, params))

    # bf16 MXU operands (f32 accumulation) vs f32 HIGHEST reference.
    np.testing.assert_allclose(np.asarray(out), np.asarray(ref),
                               rtol=2e-2, atol=2e-2)

    # spatial trace: 24 -> 11 -> 9 -> 7 -> 5, repr dim = 32*5*5 = 800
    assert out.shape == (N, 32 * 5 * 5), out.shape
    print("KERNEL_OK")
</pallas_src>

<mosaic_0001>
module attributes {stable_mosaic.version = 11 : i64} {
  func.func @kernel(%arg0: i32, %arg1: memref<176x36xbf16, #tpu.memory_space<vmem>>, %arg2: memref<36x32xbf16, #tpu.memory_space<vmem>>, %arg3: memref<3x96x32xbf16, #tpu.memory_space<vmem>>, %arg4: memref<3x96x32xbf16, #tpu.memory_space<vmem>>, %arg5: memref<3x96x32xbf16, #tpu.memory_space<vmem>>, %arg6: memref<4x32xf32, #tpu.memory_space<vmem>>, %arg7: memref<176x32xf32, #tpu.memory_space<vmem>>) attributes {dimension_semantics = [#tpu.dimension_semantics<parallel>], iteration_bounds = array<i64: 2>, scalar_prefetch = 0 : i64, scratch_operands = 0 : i64, tpu.core_type = #tpu.core_type<tc>, window_params = [{transform_indices = @transform_0, window_bounds = array<i64: 176, 36>}, {pipeline_mode = #tpu.pipeline_mode<synchronous>, transform_indices = @transform_1, window_bounds = array<i64: 36, 32>}, {pipeline_mode = #tpu.pipeline_mode<synchronous>, transform_indices = @transform_2, window_bounds = array<i64: 3, 96, 32>}, {pipeline_mode = #tpu.pipeline_mode<synchronous>, transform_indices = @transform_3, window_bounds = array<i64: 3, 96, 32>}, {pipeline_mode = #tpu.pipeline_mode<synchronous>, transform_indices = @transform_4, window_bounds = array<i64: 3, 96, 32>}, {pipeline_mode = #tpu.pipeline_mode<synchronous>, transform_indices = @transform_5, window_bounds = array<i64: 4, 32>}, {transform_indices = @transform_6, window_bounds = array<i64: 176, 32>}]} {
    %c0 = arith.constant 0 : index
    %c0_0 = arith.constant 0 : index
    %0 = vector.load %arg1[%c0, %c0_0] : memref<176x36xbf16, #tpu.memory_space<vmem>>, vector<176x36xbf16>
    %c0_1 = arith.constant 0 : index
    %c0_2 = arith.constant 0 : index
    %1 = vector.load %arg2[%c0_1, %c0_2] : memref<36x32xbf16, #tpu.memory_space<vmem>>, vector<36x32xbf16>
    %cst = arith.constant dense<0.000000e+00> : vector<176x32xf32>
    %2 = tpu.matmul %0, %1, %cst {dimension_numbers = #tpu.dot_dimension_numbers<[1], [0], [0], [1], [0, 0, 1, 1], [], []>} : vector<176x36xbf16>, vector<36x32xbf16>, vector<176x32xf32> -> vector<176x32xf32>
    %c0_3 = arith.constant 0 : index
    %c0_4 = arith.constant 0 : index
    %3 = vector.load %arg6[%c0_3, %c0_4] : memref<4x32xf32, #tpu.memory_space<vmem>>, vector<1x32xf32>
    %4 = vector.broadcast %3 : vector<1x32xf32> to vector<176x32xf32>
    %5 = arith.addf %2, %4 : vector<176x32xf32>
    %cst_5 = arith.constant 0.000000e+00 : f32
    %6 = vector.broadcast %cst_5 : f32 to vector<176x32xf32>
    %7 = arith.maximumf %5, %6 : vector<176x32xf32>
    %c175_i32 = arith.constant 175 : i32
    %8 = tpu.dynamic_rotate %7 by %c175_i32 dim 0 : vector<176x32xf32>, i32 -> vector<176x32xf32>
    %c174_i32 = arith.constant 174 : i32
    %9 = tpu.dynamic_rotate %7 by %c174_i32 dim 0 : vector<176x32xf32>, i32 -> vector<176x32xf32>
    %10 = tpu.concatenate %7, %8, %9 in 1 : vector<176x32xf32>, vector<176x32xf32>, vector<176x32xf32> -> vector<176x96xf32>
    %11 = arith.truncf %10 : vector<176x96xf32> to vector<176x96xbf16>
    %12 = vector.extract_strided_slice %11 {offsets = [0, 0], sizes = [144, 96], strides = [1, 1]} : vector<176x96xbf16> to vector<144x96xbf16>
    %c0_6 = arith.constant 0 : index
    %c0_7 = arith.constant 0 : index
    %c0_8 = arith.constant 0 : index
    %13 = vector.load %arg3[%c0_6, %c0_7, %c0_8] : memref<3x96x32xbf16, #tpu.memory_space<vmem>>, vector<1x96x32xbf16>
    %14 = vector.shape_cast %13 : vector<1x96x32xbf16> to vector<96x32xbf16>
    %cst_9 = arith.constant dense<0.000000e+00> : vector<144x32xf32>
    %15 = tpu.matmul %12, %14, %cst_9 {dimension_numbers = #tpu.dot_dimension_numbers<[1], [0], [0], [1], [0, 0, 1, 1], [], []>} : vector<144x96xbf16>, vector<96x32xbf16>, vector<144x32xf32> -> vector<144x32xf32>
    %16 = vector.extract_strided_slice %11 {offsets = [16, 0], sizes = [144, 96], strides = [1, 1]} : vector<176x96xbf16> to vector<144x96xbf16>
    %c1 = arith.constant 1 : index
    %c0_10 = arith.constant 0 : index
    %c0_11 = arith.constant 0 : index
    %17 = vector.load %arg3[%c1, %c0_10, %c0_11] : memref<3x96x32xbf16, #tpu.memory_space<vmem>>, vector<1x96x32xbf16>
    %18 = vector.shape_cast %17 : vector<1x96x32xbf16> to vector<96x32xbf16>
    %cst_12 = arith.constant dense<0.000000e+00> : vector<144x32xf32>
    %19 = tpu.matmul %16, %18, %cst_12 {dimension_numbers = #tpu.dot_dimension_numbers<[1], [0], [0], [1], [0, 0, 1, 1], [], []>} : vector<144x96xbf16>, vector<96x32xbf16>, vector<144x32xf32> -> vector<144x32xf32>
    %20 = arith.addf %15, %19 : vector<144x32xf32>
    %21 = vector.extract_strided_slice %11 {offsets = [32, 0], sizes = [144, 96], strides = [1, 1]} : vector<176x96xbf16> to vector<144x96xbf16>
    %c2 = arith.constant 2 : index
    %c0_13 = arith.constant 0 : index
    %c0_14 = arith.constant 0 : index
    %22 = vector.load %arg3[%c2, %c0_13, %c0_14] : memref<3x96x32xbf16, #tpu.memory_space<vmem>>, vector<1x96x32xbf16>
    %23 = vector.shape_cast %22 : vector<1x96x32xbf16> to vector<96x32xbf16>
    %cst_15 = arith.constant dense<0.000000e+00> : vector<144x32xf32>
    %24 = tpu.matmul %21, %23, %cst_15 {dimension_numbers = #tpu.dot_dimension_numbers<[1], [0], [0], [1], [0, 0, 1, 1], [], []>} : vector<144x96xbf16>, vector<96x32xbf16>, vector<144x32xf32> -> vector<144x32xf32>
    %25 = arith.addf %20, %24 : vector<144x32xf32>
    %c1_16 = arith.constant 1 : index
    %c0_17 = arith.constant 0 : index
    %26 = vector.load %arg6[%c1_16, %c0_17] : memref<4x32xf32, #tpu.memory_space<vmem>>, vector<1x32xf32>
    %27 = vector.broadcast %26 : vector<1x32xf32> to vector<144x32xf32>
    %28 = arith.addf %25, %27 : vector<144x32xf32>
    %cst_18 = arith.constant 0.000000e+00 : f32
    %29 = vector.broadcast %cst_18 : f32 to vector<144x32xf32>
    %30 = arith.maximumf %28, %29 : vector<144x32xf32>
    %c143_i32 = arith.constant 143 : i32
    %31 = tpu.dynamic_rotate %30 by %c143_i32 dim 0 : vector<144x32xf32>, i32 -> vector<144x32xf32>
    %c142_i32 = arith.constant 142 : i32
    %32 = tpu.dynamic_rotate %30 by %c142_i32 dim 0 : vector<144x32xf32>, i32 -> vector<144x32xf32>
    %33 = tpu.concatenate %30, %31, %32 in 1 : vector<144x32xf32>, vector<144x32xf32>, vector<144x32xf32> -> vector<144x96xf32>
    %34 = arith.truncf %33 : vector<144x96xf32> to vector<144x96xbf16>
    %35 = vector.extract_strided_slice %34 {offsets = [0, 0], sizes = [112, 96], strides = [1, 1]} : vector<144x96xbf16> to vector<112x96xbf16>
    %c0_19 = arith.constant 0 : index
    %c0_20 = arith.constant 0 : index
    %c0_21 = arith.constant 0 : index
    %36 = vector.load %arg4[%c0_19, %c0_20, %c0_21] : memref<3x96x32xbf16, #tpu.memory_space<vmem>>, vector<1x96x32xbf16>
    %37 = vector.shape_cast %36 : vector<1x96x32xbf16> to vector<96x32xbf16>
    %cst_22 = arith.constant dense<0.000000e+00> : vector<112x32xf32>
    %38 = tpu.matmul %35, %37, %cst_22 {dimension_numbers = #tpu.dot_dimension_numbers<[1], [0], [0], [1], [0, 0, 1, 1], [], []>} : vector<112x96xbf16>, vector<96x32xbf16>, vector<112x32xf32> -> vector<112x32xf32>
    %39 = vector.extract_strided_slice %34 {offsets = [16, 0], sizes = [112, 96], strides = [1, 1]} : vector<144x96xbf16> to vector<112x96xbf16>
    %c1_23 = arith.constant 1 : index
    %c0_24 = arith.constant 0 : index
    %c0_25 = arith.constant 0 : index
    %40 = vector.load %arg4[%c1_23, %c0_24, %c0_25] : memref<3x96x32xbf16, #tpu.memory_space<vmem>>, vector<1x96x32xbf16>
    %41 = vector.shape_cast %40 : vector<1x96x32xbf16> to vector<96x32xbf16>
    %cst_26 = arith.constant dense<0.000000e+00> : vector<112x32xf32>
    %42 = tpu.matmul %39, %41, %cst_26 {dimension_numbers = #tpu.dot_dimension_numbers<[1], [0], [0], [1], [0, 0, 1, 1], [], []>} : vector<112x96xbf16>, vector<96x32xbf16>, vector<112x32xf32> -> vector<112x32xf32>
    %43 = arith.addf %38, %42 : vector<112x32xf32>
    %44 = vector.extract_strided_slice %34 {offsets = [32, 0], sizes = [112, 96], strides = [1, 1]} : vector<144x96xbf16> to vector<112x96xbf16>
    %c2_27 = arith.constant 2 : index
    %c0_28 = arith.constant 0 : index
    %c0_29 = arith.constant 0 : index
    %45 = vector.load %arg4[%c2_27, %c0_28, %c0_29] : memref<3x96x32xbf16, #tpu.memory_space<vmem>>, vector<1x96x32xbf16>
    %46 = vector.shape_cast %45 : vector<1x96x32xbf16> to vector<96x32xbf16>
    %cst_30 = arith.constant dense<0.000000e+00> : vector<112x32xf32>
    %47 = tpu.matmul %44, %46, %cst_30 {dimension_numbers = #tpu.dot_dimension_numbers<[1], [0], [0], [1], [0, 0, 1, 1], [], []>} : vector<112x96xbf16>, vector<96x32xbf16>, vector<112x32xf32> -> vector<112x32xf32>
    %48 = arith.addf %43, %47 : vector<112x32xf32>
    %c2_31 = arith.constant 2 : index
    %c0_32 = arith.constant 0 : index
    %49 = vector.load %arg6[%c2_31, %c0_32] : memref<4x32xf32, #tpu.memory_space<vmem>>, vector<1x32xf32>
    %50 = vector.broadcast %49 : vector<1x32xf32> to vector<112x32xf32>
    %51 = arith.addf %48, %50 : vector<112x32xf32>
    %cst_33 = arith.constant 0.000000e+00 : f32
    %52 = vector.broadcast %cst_33 : f32 to vector<112x32xf32>
    %53 = arith.maximumf %51, %52 : vector<112x32xf32>
    %c111_i32 = arith.constant 111 : i32
    %54 = tpu.dynamic_rotate %53 by %c111_i32 dim 0 : vector<112x32xf32>, i32 -> vector<112x32xf32>
    %c110_i32 = arith.constant 110 : i32
    %55 = tpu.dynamic_rotate %53 by %c110_i32 dim 0 : vector<112x32xf32>, i32 -> vector<112x32xf32>
    %56 = tpu.concatenate %53, %54, %55 in 1 : vector<112x32xf32>, vector<112x32xf32>, vector<112x32xf32> -> vector<112x96xf32>
    %57 = arith.truncf %56 : vector<112x96xf32> to vector<112x96xbf16>
    %58 = vector.extract_strided_slice %57 {offsets = [0, 0], sizes = [80, 96], strides = [1, 1]} : vector<112x96xbf16> to vector<80x96xbf16>
    %c0_34 = arith.constant 0 : index
    %c0_35 = arith.constant 0 : index
    %c0_36 = arith.constant 0 : index
    %59 = vector.load %arg5[%c0_34, %c0_35, %c0_36] : memref<3x96x32xbf16, #tpu.memory_space<vmem>>, vector<1x96x32xbf16>
    %60 = vector.shape_cast %59 : vector<1x96x32xbf16> to vector<96x32xbf16>
    %cst_37 = arith.constant dense<0.000000e+00> : vector<80x32xf32>
    %61 = tpu.matmul %58, %60, %cst_37 {dimension_numbers = #tpu.dot_dimension_numbers<[1], [0], [0], [1], [0, 0, 1, 1], [], []>} : vector<80x96xbf16>, vector<96x32xbf16>, vector<80x32xf32> -> vector<80x32xf32>
    %62 = vector.extract_strided_slice %57 {offsets = [16, 0], sizes = [80, 96], strides = [1, 1]} : vector<112x96xbf16> to vector<80x96xbf16>
    %c1_38 = arith.constant 1 : index
    %c0_39 = arith.constant 0 : index
    %c0_40 = arith.constant 0 : index
    %63 = vector.load %arg5[%c1_38, %c0_39, %c0_40] : memref<3x96x32xbf16, #tpu.memory_space<vmem>>, vector<1x96x32xbf16>
    %64 = vector.shape_cast %63 : vector<1x96x32xbf16> to vector<96x32xbf16>
    %cst_41 = arith.constant dense<0.000000e+00> : vector<80x32xf32>
    %65 = tpu.matmul %62, %64, %cst_41 {dimension_numbers = #tpu.dot_dimension_numbers<[1], [0], [0], [1], [0, 0, 1, 1], [], []>} : vector<80x96xbf16>, vector<96x32xbf16>, vector<80x32xf32> -> vector<80x32xf32>
    %66 = arith.addf %61, %65 : vector<80x32xf32>
    %67 = vector.extract_strided_slice %57 {offsets = [32, 0], sizes = [80, 96], strides = [1, 1]} : vector<112x96xbf16> to vector<80x96xbf16>
    %c2_42 = arith.constant 2 : index
    %c0_43 = arith.constant 0 : index
    %c0_44 = arith.constant 0 : index
    %68 = vector.load %arg5[%c2_42, %c0_43, %c0_44] : memref<3x96x32xbf16, #tpu.memory_space<vmem>>, vector<1x96x32xbf16>
    %69 = vector.shape_cast %68 : vector<1x96x32xbf16> to vector<96x32xbf16>
    %cst_45 = arith.constant dense<0.000000e+00> : vector<80x32xf32>
    %70 = tpu.matmul %67, %69, %cst_45 {dimension_numbers = #tpu.dot_dimension_numbers<[1], [0], [0], [1], [0, 0, 1, 1], [], []>} : vector<80x96xbf16>, vector<96x32xbf16>, vector<80x32xf32> -> vector<80x32xf32>
    %71 = arith.addf %66, %70 : vector<80x32xf32>
    %c3 = arith.constant 3 : index
    %c0_46 = arith.constant 0 : index
    %72 = vector.load %arg6[%c3, %c0_46] : memref<4x32xf32, #tpu.memory_space<vmem>>, vector<1x32xf32>
    %73 = vector.broadcast %72 : vector<1x32xf32> to vector<80x32xf32>
    %74 = arith.addf %71, %73 : vector<80x32xf32>
    %cst_47 = arith.constant 0.000000e+00 : f32
    %75 = vector.broadcast %cst_47 : f32 to vector<80x32xf32>
    %76 = arith.maximumf %74, %75 : vector<80x32xf32>
    %c0_48 = arith.constant 0 : index
    %c0_49 = arith.constant 0 : index
    %77 = vector.load %arg7[%c0_48, %c0_49] : memref<176x32xf32, #tpu.memory_space<vmem>>, vector<80x32xf32>
    tpu.vector_store %arg7[%c0_48, %c0_49], %76 {strides = array<i32>} : memref<176x32xf32, #tpu.memory_space<vmem>>, vector<80x32xf32>,
    return
  }
  func.func @transform_0(%arg0: i32) -> (i32, i32) {
    %c0_i32 = arith.constant 0 : i32
    %c0_i32_0 = arith.constant 0 : i32
    return %arg0, %c0_i32 : i32, i32
  }
  func.func @transform_1(%arg0: i32) -> (i32, i32) {
    %c0_i32 = arith.constant 0 : i32
    %c0_i32_0 = arith.constant 0 : i32
    %c0_i32_1 = arith.constant 0 : i32
    return %c0_i32, %c0_i32_0 : i32, i32
  }
  func.func @transform_2(%arg0: i32) -> (i32, i32, i32) {
    %c0_i32 = arith.constant 0 : i32
    %c0_i32_0 = arith.constant 0 : i32
    %c0_i32_1 = arith.constant 0 : i32
    %c0_i32_2 = arith.constant 0 : i32
    return %c0_i32, %c0_i32_0, %c0_i32_1 : i32, i32, i32
  }
  func.func @transform_3(%arg0: i32) -> (i32, i32, i32) {
    %c0_i32 = arith.constant 0 : i32
    %c0_i32_0 = arith.constant 0 : i32
    %c0_i32_1 = arith.constant 0 : i32
    %c0_i32_2 = arith.constant 0 : i32
    return %c0_i32, %c0_i32_0, %c0_i32_1 : i32, i32, i32
  }
  func.func @transform_4(%arg0: i32) -> (i32, i32, i32) {
    %c0_i32 = arith.constant 0 : i32
    %c0_i32_0 = arith.constant 0 : i32
    %c0_i32_1 = arith.constant 0 : i32
    %c0_i32_2 = arith.constant 0 : i32
    return %c0_i32, %c0_i32_0, %c0_i32_1 : i32, i32, i32
  }
  func.func @transform_5(%arg0: i32) -> (i32, i32) {
    %c0_i32 = arith.constant 0 : i32
    %c0_i32_0 = arith.constant 0 : i32
    %c0_i32_1 = arith.constant 0 : i32
    return %c0_i32, %c0_i32_0 : i32, i32
  }
  func.func @transform_6(%arg0: i32) -> (i32, i32) {
    %c0_i32 = arith.constant 0 : i32
    %c0_i32_0 = arith.constant 0 : i32
    return %arg0, %c0_i32 : i32, i32
  }
}

</mosaic_0001>

<llo_original>
// kernel: tpu_custom_call.1
$region0: #{tpu_custom_call.1}
  #allocation0 [shape = 'u32[]', space=smem, size = 0x4, offset = 0x4, fixed_abs, tag = 'smem constant byte address 0x4 - core index']
  #allocation1 [shape = 'u32[144,128]{1,0:T(1,128)}', space=vmem, size = 0x12000, scoped, tag = 'internal scratch']
  %s0 = inlined_call_operand.vmem [shape: bf16[352,36], index: 0, kind: input, shape index: {}]
  %s1 = inlined_call_operand.vmem [shape: bf16[36,32], index: 1, kind: input, shape index: {}]
  %s2 = inlined_call_operand.vmem [shape: bf16[3,96,32], index: 2, kind: input, shape index: {}]
  %s3 = inlined_call_operand.vmem [shape: bf16[3,96,32], index: 3, kind: input, shape index: {}]
  %s4 = inlined_call_operand.vmem [shape: bf16[3,96,32], index: 4, kind: input, shape index: {}]
  %s5 = inlined_call_operand.vmem [shape: f32[4,32], index: 5, kind: input, shape index: {}]
  %s6 = inlined_call_operand.vmem [shape: f32[352,32], index: 6, kind: output, shape index: {}]
  %s7 = sld [smem:[#allocation0]]
  $region57: #{tpu_custom_call.1} parent=0
    _
  %s9 = ssub.s32 1, %s7
  %s10 = scalar_select 0, %s9, %s7
  loop: start=0, step=1, limit=4
  $region2: #{tpu_custom_call.1} parent=0 // loop_pre_header
    _
  $region3: #{tpu_custom_call.1} parent=0 // loop_header
    %s12 = sphi 0, %s16
    %p13 = scmp.ge.s32.totalorder %s12, 4
    %s22 = sphi 0, %s24
    %s25 = sphi 0, %s22
    %s26 = sphi 0, %s25
    %s42 = sphi 0, %s26
    %s46 = sphi 0, %s46
    %s48 = sphi 0, %s46
    %s49 = sphi 0, %s48
    %s63 = sphi 0, %s49
    %s67 = sphi 0, %s67
    %s69 = sphi 0, %s67
    %s70 = sphi 0, %s69
    %s84 = sphi 0, %s70
    %s88 = sphi 0, %s88
    %s90 = sphi 0, %s88
    %s91 = sphi 0, %s90
    %s105 = sphi 0, %s91
    %s109 = sphi 0, %s109
    %s111 = sphi 0, %s109
    %s112 = sphi 0, %s111
    %s126 = sphi 0, %s112
    %s130 = sphi 0, %s130
    %s132 = sphi 0, %s130
    %s133 = sphi 0, %s132
    %s147 = sphi 0, %s133
    %s153 = sphi 0, %s155
    %s156 = sphi 0, %s153
    %s157 = sphi 0, %s156
    %s173 = sphi 0, %s157
  $region4: #{tpu_custom_call.1} parent=0 // loop_header_branch
    %15 = sbr.rel (%p13) target = $region8
  $region5: #{tpu_custom_call.1} parent=0 // loop_body
    %s17 = ssub.s32 %s12, 1
    %s18 = ssub.s32 %s12, 2
    %s19 = sadd.s32 %s12, 1
    %s20 = ssub.s32 %s12, %s19
    %p21 = scmp.eq.s32.totalorder %s20, 0
    %s23 = sadd.s32 %s22, 1
    %s24 = scalar_select %p21, %s22, %s23
    %p27 = pneg %p21
    %p28 = scmp.eq.s32.totalorder %s12, 1
    %p29 = por %p27, %p28
    %p30 = scmp.ne.s32.totalorder %s22, %s25
    %p31 = scmp.eq.s32.totalorder %s12, 0
    %p32 = por %p30, %p31
    %p33 = scmp.ne.s32.totalorder %s22, %s25
    %p34 = scmp.eq.s32.totalorder %s17, 1
    %p35 = por %p33, %p34
    %p36 = scmp.ne.s32.totalorder %s25, %s26
    %p37 = scmp.eq.s32.totalorder %s17, 0
    %p38 = por %p36, %p37
    %p39 = scmp.ne.s32.totalorder %s25, %s26
    %p40 = scmp.eq.s32.totalorder %s18, 1
    %p41 = por %p39, %p40
    %p43 = scmp.ne.s32.totalorder %s26, %s42
    %p44 = scmp.eq.s32.totalorder %s18, 0
    %p45 = por %p43, %p44
    %s47 = sadd.s32 %s46, 1
    %p50 = scmp.eq.s32.totalorder %s12, 1
    %p51 = scmp.ne.s32.totalorder %s46, %s48
    %p52 = scmp.eq.s32.totalorder %s12, 0
    %p53 = por %p51, %p52
    %p54 = scmp.ne.s32.totalorder %s46, %s48
    %p55 = scmp.eq.s32.totalorder %s17, 1
    %p56 = por %p54, %p55
    %p57 = scmp.ne.s32.totalorder %s48, %s49
    %p58 = scmp.eq.s32.totalorder %s17, 0
    %p59 = por %p57, %p58
    %p60 = scmp.ne.s32.totalorder %s48, %s49
    %p61 = scmp.eq.s32.totalorder %s18, 1
    %p62 = por %p60, %p61
    %p64 = scmp.ne.s32.totalorder %s49, %s63
    %p65 = scmp.eq.s32.totalorder %s18, 0
    %p66 = por %p64, %p65
    %s68 = sadd.s32 %s67, 1
    %p71 = scmp.eq.s32.totalorder %s12, 1
    %p72 = scmp.ne.s32.totalorder %s67, %s69
    %p73 = scmp.eq.s32.totalorder %s12, 0
    %p74 = por %p72, %p73
    %p75 = scmp.ne.s32.totalorder %s67, %s69
    %p76 = scmp.eq.s32.totalorder %s17, 1
    %p77 = por %p75, %p76
    %p78 = scmp.ne.s32.totalorder %s69, %s70
    %p79 = scmp.eq.s32.totalorder %s17, 0
    %p80 = por %p78, %p79
    %p81 = scmp.ne.s32.totalorder %s69, %s70
    %p82 = scmp.eq.s32.totalorder %s18, 1
    %p83 = por %p81, %p82
    %p85 = scmp.ne.s32.totalorder %s70, %s84
    %p86 = scmp.eq.s32.totalorder %s18, 0
    %p87 = por %p85, %p86
    %s89 = sadd.s32 %s88, 1
    %p92 = scmp.eq.s32.totalorder %s12, 1
    %p93 = scmp.ne.s32.totalorder %s88, %s90
    %p94 = scmp.eq.s32.totalorder %s12, 0
    %p95 = por %p93, %p94
    %p96 = scmp.ne.s32.totalorder %s88, %s90
    %p97 = scmp.eq.s32.totalorder %s17, 1
    %p98 = por %p96, %p97
    %p99 = scmp.ne.s32.totalorder %s90, %s91
    %p100 = scmp.eq.s32.totalorder %s17, 0
    %p101 = por %p99, %p100
    %p102 = scmp.ne.s32.totalorder %s90, %s91
    %p103 = scmp.eq.s32.totalorder %s18, 1
    %p104 = por %p102, %p103
    %p106 = scmp.ne.s32.totalorder %s91, %s105
    %p107 = scmp.eq.s32.totalorder %s18, 0
    %p108 = por %p106, %p107
    %s110 = sadd.s32 %s109, 1
    %p113 = scmp.eq.s32.totalorder %s12, 1
    %p114 = scmp.ne.s32.totalorder %s109, %s111
    %p115 = scmp.eq.s32.totalorder %s12, 0
    %p116 = por %p114, %p115
    %p117 = scmp.ne.s32.totalorder %s109, %s111
    %p118 = scmp.eq.s32.totalorder %s17, 1
    %p119 = por %p117, %p118
    %p120 = scmp.ne.s32.totalorder %s111, %s112
    %p121 = scmp.eq.s32.totalorder %s17, 0
    %p122 = por %p120, %p121
    %p123 = scmp.ne.s32.totalorder %s111, %s112
    %p124 = scmp.eq.s32.totalorder %s18, 1
    %p125 = por %p123, %p124
    %p127 = scmp.ne.s32.totalorder %s112, %s126
    %p128 = scmp.eq.s32.totalorder %s18, 0
    %p129 = por %p127, %p128
    %s131 = sadd.s32 %s130, 1
    %p134 = scmp.eq.s32.totalorder %s12, 1
    %p135 = scmp.ne.s32.totalorder %s130, %s132
    %p136 = scmp.eq.s32.totalorder %s12, 0
    %p137 = por %p135, %p136
    %p138 = scmp.ne.s32.totalorder %s130, %s132
    %p139 = scmp.eq.s32.totalorder %s17, 1
    %p140 = por %p138, %p139
    %p141 = scmp.ne.s32.totalorder %s132, %s133
    %p142 = scmp.eq.s32.totalorder %s17, 0
    %p143 = por %p141, %p142
    %p144 = scmp.ne.s32.totalorder %s132, %s133
    %p145 = scmp.eq.s32.totalorder %s18, 1
    %p146 = por %p144, %p145
    %p148 = scmp.ne.s32.totalorder %s133, %s147
    %p149 = scmp.eq.s32.totalorder %s18, 0
    %p150 = por %p148, %p149
    %s151 = ssub.s32 %s12, %s19
    %p152 = scmp.eq.s32.totalorder %s151, 0
    %s154 = sadd.s32 %s153, 1
    %s155 = scalar_select %p152, %s153, %s154
    %p158 = pneg %p152
    %p159 = scmp.eq.s32.totalorder %s12, 1
    %p160 = por %p158, %p159
    %p161 = scmp.ne.s32.totalorder %s153, %s156
    %p162 = scmp.eq.s32.totalorder %s12, 0
    %p163 = por %p161, %p162
    %p164 = scmp.ne.s32.totalorder %s153, %s156
    %p165 = scmp.eq.s32.totalorder %s17, 1
    %p166 = por %p164, %p165
    %p167 = scmp.ne.s32.totalorder %s156, %s157
    %p168 = scmp.eq.s32.totalorder %s17, 0
    %p169 = por %p167, %p168
    %p170 = scmp.ne.s32.totalorder %s156, %s157
    %p171 = scmp.eq.s32.totalorder %s18, 1
    %p172 = por %p170, %p171
    %p174 = scmp.ne.s32.totalorder %s157, %s173
    %p175 = scmp.eq.s32.totalorder %s18, 0
    %p176 = por %p174, %p175
    %p177 = scmp.le.s32.totalorder 1, %s12
    %p178 = scmp.lt.s32.totalorder %s12, 3
    %p179 = pnand %p177, %p178
    %p180 = pneg %p179
    // Predicated region
    $region9: #{tpu_custom_call.1} parent=5 // pred_check
      _
    $region10: #{tpu_custom_call.1} parent=5 // pred_check_branch
      %182 = sbr.rel (%p179) target = $region12
    $region11: #{tpu_custom_call.1} parent=5 // pred_region
      %s183 = ssub.s32 %s12, 1
      // Predicated region
      $region13: #{tpu_custom_call.1} parent=11 // pred_check
        %p184 = pneg %p59
      $region14: #{tpu_custom_call.1} parent=11 // pred_check_branch
        %186 = sbr.rel (%p184) target = $region16
      $region15: #{tpu_custom_call.1} parent=11 // pred_region
        _
      $region16: #{tpu_custom_call.1} parent=11 // pred_fallthru
        _
      // Predicated region
      $region17: #{tpu_custom_call.1} parent=11 // pred_check
        %p187 = pneg %p80
      $region18: #{tpu_custom_call.1} parent=11 // pred_check_branch
        %189 = sbr.rel (%p187) target = $region20
      $region19: #{tpu_custom_call.1} parent=11 // pred_region
        _
      $region20: #{tpu_custom_call.1} parent=11 // pred_fallthru
        _
      // Predicated region
      $region21: #{tpu_custom_call.1} parent=11 // pred_check
        %p190 = pneg %p101
      $region22: #{tpu_custom_call.1} parent=11 // pred_check_branch
        %192 = sbr.rel (%p190) target = $region24
      $region23: #{tpu_custom_call.1} parent=11 // pred_region
        _
      $region24: #{tpu_custom_call.1} parent=11 // pred_fallthru
        _
      // Predicated region
      $region25: #{tpu_custom_call.1} parent=11 // pred_check
        %p193 = pneg %p122
      $region26: #{tpu_custom_call.1} parent=11 // pred_check_branch
        %195 = sbr.rel (%p193) target = $region28
      $region27: #{tpu_custom_call.1} parent=11 // pred_region
        _
      $region28: #{tpu_custom_call.1} parent=11 // pred_fallthru
        _
      // Predicated region
      $region29: #{tpu_custom_call.1} parent=11 // pred_check
        %p196 = pneg %p143
      $region30: #{tpu_custom_call.1} parent=11 // pred_check_branch
        %198 = sbr.rel (%p196) target = $region32
      $region31: #{tpu_custom_call.1} parent=11 // pred_region
        _
      $region32: #{tpu_custom_call.1} parent=11 // pred_fallthru
        _
    $region12: #{tpu_custom_call.1} parent=5 // pred_fallthru
      _
    %p199 = scmp.lt.s32.totalorder %s12, 2
    // Predicated region
    $region33: #{tpu_custom_call.1} parent=5 // pred_check
      %p200 = pneg %p199
    $region34: #{tpu_custom_call.1} parent=5 // pred_check_branch
      %202 = sbr.rel (%p200) target = $region36
    $region35: #{tpu_custom_call.1} parent=5 // pred_region
      // Predicated region
      $region37: #{tpu_custom_call.1} parent=35 // pred_check
        %p203 = pneg %p32
      $region38: #{tpu_custom_call.1} parent=35 // pred_check_branch
        %205 = sbr.rel (%p203) target = $region40
      $region39: #{tpu_custom_call.1} parent=35 // pred_region
        %s206 = smul.u32 22, %s12
        %p207 = scmp.lt.s32.totalorder %s206, 43
        %s208 = scalar_select %p207, %s206, 43
        %s209 = smul.addr %s208, 4
        %s210 = scalar_lea.vmem %s0, %s209
        %s211 = smul.u32 22, %s12
      $region40: #{tpu_custom_call.1} parent=35 // pred_fallthru
        _
    $region36: #{tpu_custom_call.1} parent=5 // pred_fallthru
      _
    %p212 = scmp.le.s32.totalorder 1, %s12
    %p213 = scmp.lt.s32.totalorder %s12, 3
    %p214 = pnand %p212, %p213
    %p215 = pneg %p214
    // Predicated region
    $region41: #{tpu_custom_call.1} parent=5 // pred_check
      _
    $region42: #{tpu_custom_call.1} parent=5 // pred_check_branch
      %217 = sbr.rel (%p214) target = $region44
    $region43: #{tpu_custom_call.1} parent=5 // pred_region
      %s218 = ssub.s32 %s12, 1
      %s219 = smul.u32 22, %s17
      %p220 = scmp.lt.s32.totalorder %s219, 43
      %s221 = scalar_select %p220, %s219, 43
      %s222 = smul.addr %s221, 4
      %s223 = scalar_lea.vmem %s0, %s222
      %p224 = pneg %p38
      %p225 = pneg %p35
      %p226 = pneg %p59
      %p227 = pneg %p56
      %p228 = pneg %p80
      %p229 = pneg %p77
      %p230 = pneg %p101
      %p231 = pneg %p98
      %p232 = pneg %p122
      %p233 = pneg %p119
      %p234 = pneg %p143
      %p235 = pneg %p140
      %p236 = pneg %p169
      %p237 = pneg %p166
      %s238 = smul.u32 22, %s17
      %p239 = scmp.lt.s32.totalorder %s238, 43
      %s240 = scalar_select %p239, %s238, 43
      %s241 = smul.addr %s240, 8
      %s242 = scalar_lea.vmem %s6, %s241
      %s243 = smul.u32 22, %s17
      %p244 = scmp.lt.s32.totalorder %s243, 43
      %s245 = scalar_select %p244, %s243, 43
      %s246 = smul.addr %s245, 4
      %s247 = scalar_lea.vmem %s0, %s246
      %s248 = smul.u32 22, %s17
      %s249 = smul.u32 22, %s17
      %p250 = scmp.lt.s32.totalorder %s249, 43
      %s251 = scalar_select %p250, %s249, 43
      %s252 = smul.addr %s251, 8
      %s253 = scalar_lea.vmem %s6, %s252
      %s254 = smul.u32 22, %s17
      %v256 = vld [vmem:[%s247] sm:$0xf]
      %v257 = vld [vmem:[%s247 + $0x4] sm:$0xf]
      %v258 = vld [vmem:[%s247 + $0x8] sm:$0xf]
      %v259 = vld [vmem:[%s247 + $0xc] sm:$0xf]
      %v260 = vld [vmem:[%s247 + $0x10] sm:$0xf]
      %v261 = vld [vmem:[%s247 + $0x14] sm:$0xf]
      %v262 = vld [vmem:[%s247 + $0x18] sm:$0xf]
      %v263 = vld [vmem:[%s247 + $0x1c] sm:$0xf]
      %v264 = vld [vmem:[%s247 + $0x20] sm:$0xf]
      %v265 = vld [vmem:[%s247 + $0x24] sm:$0xf]
      %v266 = vld [vmem:[%s247 + $0x28] sm:$0xf]
      %v267 = vld [vmem:[%s247 + $0x2c] sm:$0xf]
      %v268 = vld [vmem:[%s247 + $0x30] sm:$0xf]
      %v269 = vld [vmem:[%s247 + $0x34] sm:$0xf]
      %v270 = vld [vmem:[%s247 + $0x38] sm:$0xf]
      %v271 = vld [vmem:[%s247 + $0x3c] sm:$0xf]
      %v272 = vld [vmem:[%s247 + $0x40] sm:$0xf]
      %v273 = vld [vmem:[%s247 + $0x44] sm:$0xf]
      %v274 = vld [vmem:[%s247 + $0x48] sm:$0xf]
      %v275 = vld [vmem:[%s247 + $0x4c] sm:$0xf]
      %v276 = vld [vmem:[%s247 + $0x50] sm:$0xf]
      %v277 = vld [vmem:[%s247 + $0x54] sm:$0xf]
      %v278 = vld [vmem:[%s1] sm:$0xf]
      %v279 = vld [vmem:[%s1 + $0x4] sm:$0xf]
      %v280 = vld [vmem:[%s1 + $0x8] sm:$0xf]
      %v281 = vld [vmem:[%s1 + $0xc] sm:$0xf]
      %v282 = vld [vmem:[%s1 + $0x10] sm:$0x3]
      %v283 = vld [vmem:[%s5] sm:$0x1]
      %v284 = vlaneseq
      %v285 = vshrl.u32 %v284, 7
      %v286 = vsub.s32 0, %v285
      %v287 = vrot.slane %v283, %v286
      %v310 = vunpack.c.l.b16 %v256
      %v311 = vunpack.c.l.b16 %v257
      %v312 = vunpack.c.l.b16 %v258
      %v313 = vunpack.c.l.b16 %v259
      %v314 = vunpack.c.l.b16 %v260
      %v315 = vunpack.c.l.b16 %v261
      %v316 = vunpack.c.l.b16 %v262
      %v317 = vunpack.c.l.b16 %v263
      %v318 = vunpack.c.l.b16 %v264
      %v319 = vunpack.c.l.b16 %v265
      %v320 = vunpack.c.l.b16 %v266
      %v321 = vunpack.c.l.b16 %v267
      %v322 = vunpack.c.l.b16 %v268
      %v323 = vunpack.c.l.b16 %v269
      %v324 = vunpack.c.l.b16 %v270
      %v325 = vunpack.c.l.b16 %v271
      %v326 = vunpack.c.l.b16 %v272
      %v327 = vunpack.c.l.b16 %v273
      %v328 = vunpack.c.l.b16 %v274
      %v329 = vunpack.c.l.b16 %v275
      %v330 = vunpack.c.l.b16 %v276
      %v331 = vunpack.c.l.b16 %v277
      %v332 = vpack.c.b16 %v311, %v310
      %v333 = vpack.c.b16 %v313, %v312
      %v334 = vpack.c.b16 %v315, %v314
      %v335 = vpack.c.b16 %v317, %v316
      %v336 = vpack.c.b16 %v319, %v318
      %v337 = vpack.c.b16 %v321, %v320
      %v338 = vpack.c.b16 %v323, %v322
      %v339 = vpack.c.b16 %v325, %v324
      %v340 = vpack.c.b16 %v327, %v326
      %v341 = vpack.c.b16 %v329, %v328
      %v342 = vpack.c.b16 %v331, %v330
      %v348 = vunpack.c.l.b16 %v278
      %v349 = vunpack.c.l.b16 %v279
      %v350 = vunpack.c.l.b16 %v280
      %v351 = vunpack.c.l.b16 %v281
      %v352 = vunpack.c.l.b16 %v282
      %v353 = vpack.c.b16 %v349, %v348
      %v354 = vpack.c.b16 %v351, %v350
      %v355 = vpack.c.b16 %v352, %v352
      %vm358 = vcmask 293888
      %v360 = vsel %vm358, %v332, 0
      %v363 = vsel %vm358, %v333, 0
      %v366 = vsel %vm358, %v334, 0
      %v369 = vsel %vm358, %v335, 0
      %v372 = vsel %vm358, %v336, 0
      %v375 = vsel %vm358, %v337, 0
      %v378 = vsel %vm358, %v338, 0
      %v381 = vsel %vm358, %v339, 0
      %v384 = vsel %vm358, %v340, 0
      %v387 = vsel %vm358, %v341, 0
      %v390 = vsel %vm358, %v342, 0
      %vm392 = vcmask 1041408
      %v394 = vsel %vm392, %v355, 0
      %396 = vmatprep.subr.bf16.mxu0 0
      %397 = vmatpush1.bf16.msra.mxu0 0
      %398 = vmatprep.subr.bf16.mxu0 0
      %399 = vmatpush1.bf16.msra.mxu0 0
      %400 = vmatprep.subr.bf16.mxu0 0
      %401 = vmatpush1.bf16.msra.mxu0 0
      %402 = vmatprep.subr.bf16.mxu0 0
      %403 = vmatpush1.bf16.msra.mxu0 0
      %404 = vmatprep.subr.bf16.mxu0 0
      %405 = vmatpush1.bf16.msra.mxu0 0
      %406 = vmatprep.subr.bf16.mxu0 0
      %407 = vmatpush1.bf16.msra.mxu0 %v394
      %408 = vmatprep.subr.bf16.mxu0 0
      %409 = vmatpush1.bf16.msra.mxu0 %v354
      %410 = vmatprep.subr.bf16.mxu0 0
      %411 = vmatpush1.bf16.msra.mxu0 %v353
      %412 = vmatprep.subr.bf16.mxu0 0
      %413 = vmatpush2.bf16.msra.mxu0 0
      %414 = vmatprep.subr.bf16.mxu0 0
      %415 = vmatpush2.bf16.msra.mxu0 0
      %416 = vmatprep.subr.bf16.mxu0 0
      %417 = vmatpush2.bf16.msra.mxu0 0
      %418 = vmatprep.subr.bf16.mxu0 0
      %419 = vmatpush2.bf16.msra.mxu0 0
      %420 = vmatprep.subr.bf16.mxu0 0
      %421 = vmatpush2.bf16.msra.mxu0 0
      %422 = vmatprep.subr.bf16.mxu0 0
      %423 = vmatpush2.bf16.msra.mxu0 0
      %424 = vmatprep.subr.bf16.mxu0 0
      %425 = vmatpush2.bf16.msra.mxu0 0
      %426 = vmatprep.subr.bf16.mxu0 0
      %427 = vmatpush2.bf16.msra.mxu0 0
      %428 = vmatprep.mubr.bf16.mxu0 0
      %429 = vmatmul.mubr.bf16.gmra.mxu0 %v360
      %v430 = vpop.f32.mrf.mxu0
      %v431 = vadd.f32 %v287, %v430
      %v432 = vpop.f32.mrf.mxu0
      %v433 = vpop.f32.mrf.mxu0
      %v434 = vadd.f32 %v287, %v433
      %v435 = vpop.f32.mrf.mxu0
      %436 = vmatprep.mubr.bf16.mxu0 0
      %437 = vmatmul.mubr.bf16.gmra.mxu0 %v363
      %v438 = vpop.f32.mrf.mxu0
      %v439 = vadd.f32 %v287, %v438
      %v440 = vpop.f32.mrf.mxu0
      %v441 = vpop.f32.mrf.mxu0
      %v442 = vadd.f32 %v287, %v441
      %v443 = vpop.f32.mrf.mxu0
      %444 = vmatprep.mubr.bf16.mxu0 0
      %445 = vmatmul.mubr.bf16.gmra.mxu0 %v366
      %v446 = vpop.f32.mrf.mxu0
      %v447 = vadd.f32 %v287, %v446
      %v448 = vpop.f32.mrf.mxu0
      %v449 = vpop.f32.mrf.mxu0
      %v450 = vadd.f32 %v287, %v449
      %v451 = vpop.f32.mrf.mxu0
      %452 = vmatprep.mubr.bf16.mxu0 0
      %453 = vmatmul.mubr.bf16.gmra.mxu0 %v369
      %v454 = vpop.f32.mrf.mxu0
      %v455 = vadd.f32 %v287, %v454
      %v456 = vpop.f32.mrf.mxu0
      %v457 = vpop.f32.mrf.mxu0
      %v458 = vadd.f32 %v287, %v457
      %v459 = vpop.f32.mrf.mxu0
      %460 = vmatprep.mubr.bf16.mxu0 0
      %461 = vmatmul.mubr.bf16.gmra.mxu0 %v372
      %v462 = vpop.f32.mrf.mxu0
      %v463 = vadd.f32 %v287, %v462
      %v464 = vpop.f32.mrf.mxu0
      %v465 = vpop.f32.mrf.mxu0
      %v466 = vadd.f32 %v287, %v465
      %v467 = vpop.f32.mrf.mxu0
      %468 = vmatprep.mubr.bf16.mxu0 0
      %469 = vmatmul.mubr.bf16.gmra.mxu0 %v375
      %v470 = vpop.f32.mrf.mxu0
      %v471 = vadd.f32 %v287, %v470
      %v472 = vpop.f32.mrf.mxu0
      %v473 = vpop.f32.mrf.mxu0
      %v474 = vadd.f32 %v287, %v473
      %v475 = vpop.f32.mrf.mxu0
      %476 = vmatprep.mubr.bf16.mxu0 0
      %477 = vmatmul.mubr.bf16.gmra.mxu0 %v378
      %v478 = vpop.f32.mrf.mxu0
      %v479 = vadd.f32 %v287, %v478
      %v480 = vpop.f32.mrf.mxu0
      %v481 = vpop.f32.mrf.mxu0
      %v482 = vadd.f32 %v287, %v481
      %v483 = vpop.f32.mrf.mxu0
      %484 = vmatprep.mubr.bf16.mxu0 0
      %485 = vmatmul.mubr.bf16.gmra.mxu0 %v381
      %v486 = vpop.f32.mrf.mxu0
      %v487 = vadd.f32 %v287, %v486
      %v488 = vpop.f32.mrf.mxu0
      %v489 = vpop.f32.mrf.mxu0
      %v490 = vadd.f32 %v287, %v489
      %v491 = vpop.f32.mrf.mxu0
      %492 = vmatprep.mubr.bf16.mxu0 0
      %493 = vmatmul.mubr.bf16.gmra.mxu0 %v384
      %v494 = vpop.f32.mrf.mxu0
      %v495 = vadd.f32 %v287, %v494
      %v496 = vpop.f32.mrf.mxu0
      %v497 = vpop.f32.mrf.mxu0
      %v498 = vadd.f32 %v287, %v497
      %v499 = vpop.f32.mrf.mxu0
      %500 = vmatprep.mubr.bf16.mxu0 0
      %501 = vmatmul.mubr.bf16.gmra.mxu0 %v387
      %v502 = vpop.f32.mrf.mxu0
      %v503 = vadd.f32 %v287, %v502
      %v504 = vpop.f32.mrf.mxu0
      %v505 = vpop.f32.mrf.mxu0
      %v506 = vadd.f32 %v287, %v505
      %v507 = vpop.f32.mrf.mxu0
      %508 = vmatprep.mubr.bf16.mxu0 0
      %509 = vmatmul.mubr.bf16.gmra.mxu0 %v390
      %v510 = vpop.f32.mrf.mxu0
      %v511 = vadd.f32 %v287, %v510
      %v512 = vpop.f32.mrf.mxu0
      %v513 = vpop.f32.mrf.mxu0
      %v514 = vadd.f32 %v287, %v513
      %v515 = vpop.f32.mrf.mxu0
      %516 = vdwg.mxu0
      %v517 = vmax.f32 %v431, 0.0
      %v518 = vmax.f32 %v434, 0.0
      %v519 = vmax.f32 %v439, 0.0
      %v520 = vmax.f32 %v442, 0.0
      %v521 = vmax.f32 %v447, 0.0
      %v522 = vmax.f32 %v450, 0.0
      %v523 = vmax.f32 %v455, 0.0
      %v524 = vmax.f32 %v458, 0.0
      %v525 = vmax.f32 %v463, 0.0
      %v526 = vmax.f32 %v466, 0.0
      %v527 = vmax.f32 %v471, 0.0
      %v528 = vmax.f32 %v474, 0.0
      %v529 = vmax.f32 %v479, 0.0
      %v530 = vmax.f32 %v482, 0.0
      %v531 = vmax.f32 %v487, 0.0
      %v532 = vmax.f32 %v490, 0.0
      %v533 = vmax.f32 %v495, 0.0
      %v534 = vmax.f32 %v498, 0.0
      %v535 = vmax.f32 %v503, 0.0
      %v536 = vmax.f32 %v506, 0.0
      %v537 = vmax.f32 %v511, 0.0
      %v538 = vmax.f32 %v514, 0.0
      %v539 = vrot.slane %v517, 1
      %v540 = vrot.slane %v518, 1
      %v541 = vrot.slane %v519, 1
      %v542 = vrot.slane %v520, 1
      %v543 = vrot.slane %v521, 1
      %v544 = vrot.slane %v522, 1
      %v545 = vrot.slane %v523, 1
      %v546 = vrot.slane %v524, 1
      %v547 = vrot.slane %v525, 1
      %v548 = vrot.slane %v526, 1
      %v549 = vrot.slane %v527, 1
      %v550 = vrot.slane %v528, 1
      %v551 = vrot.slane %v529, 1
      %v552 = vrot.slane %v530, 1
      %v553 = vrot.slane %v531, 1
      %v554 = vrot.slane %v532, 1
      %v555 = vrot.slane %v533, 1
      %v556 = vrot.slane %v534, 1
      %v557 = vrot.slane %v535, 1
      %v558 = vrot.slane %v536, 1
      %v559 = vrot.slane %v537, 1
      %v560 = vrot.slane %v538, 1
      %v561 = vlaneseq
      %v562 = vshrl.u32 %v561, 7
      %vm563 = vcmp.lt.s32.totalorder %v562, 7
      %v564 = vsel %vm563, %v559, %v560
      %v565 = vsel %vm563, %v558, %v559
      %v566 = vsel %vm563, %v557, %v558
      %v567 = vsel %vm563, %v556, %v557
      %v568 = vsel %vm563, %v555, %v556
      %v569 = vsel %vm563, %v554, %v555
      %v570 = vsel %vm563, %v553, %v554
      %v571 = vsel %vm563, %v552, %v553
      %v572 = vsel %vm563, %v551, %v552
      %v573 = vsel %vm563, %v550, %v551
      %v574 = vsel %vm563, %v549, %v550
      %v575 = vsel %vm563, %v548, %v549
      %v576 = vsel %vm563, %v547, %v548
      %v577 = vsel %vm563, %v546, %v547
      %v578 = vsel %vm563, %v545, %v546
      %v579 = vsel %vm563, %v544, %v545
      %v580 = vsel %vm563, %v543, %v544
      %v581 = vsel %vm563, %v542, %v543
      %v582 = vsel %vm563, %v541, %v542
      %v583 = vsel %vm563, %v540, %v541
      %v584 = vsel %vm563, %v539, %v540
      %v585 = vsel %vm563, %v560, %v539
      %v586 = vrot.slane %v517, 2
      %v587 = vrot.slane %v518, 2
      %v588 = vrot.slane %v519, 2
      %v589 = vrot.slane %v520, 2
      %v590 = vrot.slane %v521, 2
      %v591 = vrot.slane %v522, 2
      %v592 = vrot.slane %v523, 2
      %v593 = vrot.slane %v524, 2
      %v594 = vrot.slane %v525, 2
      %v595 = vrot.slane %v526, 2
      %v596 = vrot.slane %v527, 2
      %v597 = vrot.slane %v528, 2
      %v598 = vrot.slane %v529, 2
      %v599 = vrot.slane %v530, 2
      %v600 = vrot.slane %v531, 2
      %v601 = vrot.slane %v532, 2
      %v602 = vrot.slane %v533, 2
      %v603 = vrot.slane %v534, 2
      %v604 = vrot.slane %v535, 2
      %v605 = vrot.slane %v536, 2
      %v606 = vrot.slane %v537, 2
      %v607 = vrot.slane %v538, 2
      %vm608 = vcmp.lt.s32.totalorder %v562, 6
      %v609 = vsel %vm608, %v606, %v607
      %v610 = vsel %vm608, %v605, %v606
      %v611 = vsel %vm608, %v604, %v605
      %v612 = vsel %vm608, %v603, %v604
      %v613 = vsel %vm608, %v602, %v603
      %v614 = vsel %vm608, %v601, %v602
      %v615 = vsel %vm608, %v600, %v601
      %v616 = vsel %vm608, %v599, %v600
      %v617 = vsel %vm608, %v598, %v599
      %v618 = vsel %vm608, %v597, %v598
      %v619 = vsel %vm608, %v596, %v597
      %v620 = vsel %vm608, %v595, %v596
      %v621 = vsel %vm608, %v594, %v595
      %v622 = vsel %vm608, %v593, %v594
      %v623 = vsel %vm608, %v592, %v593
      %v624 = vsel %vm608, %v591, %v592
      %v625 = vsel %vm608, %v590, %v591
      %v626 = vsel %vm608, %v589, %v590
      %v627 = vsel %vm608, %v588, %v589
      %v628 = vsel %vm608, %v587, %v588
      %v629 = vsel %vm608, %v586, %v587
      %v630 = vsel %vm608, %v607, %v586
      %653 = vrot.lane.b32.xlu0 %v584, 32
      %v654 = vpop.permute.xlu0 %653
      %655 = vrot.lane.b32.xlu0 %v583, 32
      %v656 = vpop.permute.xlu0 %655
      %657 = vrot.lane.b32.xlu0 %v582, 32
      %v658 = vpop.permute.xlu0 %657
      %659 = vrot.lane.b32.xlu0 %v581, 32
      %v660 = vpop.permute.xlu0 %659
      %661 = vrot.lane.b32.xlu0 %v580, 32
      %v662 = vpop.permute.xlu0 %661
      %663 = vrot.lane.b32.xlu0 %v579, 32
      %v664 = vpop.permute.xlu0 %663
      %665 = vrot.lane.b32.xlu0 %v578, 32
      %v666 = vpop.permute.xlu0 %665
      %667 = vrot.lane.b32.xlu0 %v577, 32
      %v668 = vpop.permute.xlu0 %667
      %669 = vrot.lane.b32.xlu0 %v576, 32
      %v670 = vpop.permute.xlu0 %669
      %671 = vrot.lane.b32.xlu0 %v575, 32
      %v672 = vpop.permute.xlu0 %671
      %673 = vrot.lane.b32.xlu0 %v574, 32
      %v674 = vpop.permute.xlu0 %673
      %675 = vrot.lane.b32.xlu0 %v573, 32
      %v676 = vpop.permute.xlu0 %675
      %677 = vrot.lane.b32.xlu0 %v572, 32
      %v678 = vpop.permute.xlu0 %677
      %679 = vrot.lane.b32.xlu0 %v571, 32
      %v680 = vpop.permute.xlu0 %679
      %681 = vrot.lane.b32.xlu0 %v570, 32
      %v682 = vpop.permute.xlu0 %681
      %683 = vrot.lane.b32.xlu0 %v569, 32
      %v684 = vpop.permute.xlu0 %683
      %685 = vrot.lane.b32.xlu0 %v568, 32
      %v686 = vpop.permute.xlu0 %685
      %687 = vrot.lane.b32.xlu0 %v567, 32
      %v688 = vpop.permute.xlu0 %687
      %689 = vrot.lane.b32.xlu0 %v566, 32
      %v690 = vpop.permute.xlu0 %689
      %691 = vrot.lane.b32.xlu0 %v565, 32
      %v692 = vpop.permute.xlu0 %691
      %693 = vrot.lane.b32.xlu0 %v564, 32
      %v694 = vpop.permute.xlu0 %693
      %695 = vrot.lane.b32.xlu0 %v585, 32
      %v696 = vpop.permute.xlu0 %695
      %741 = vrot.lane.b32.xlu0 %v629, 64
      %v742 = vpop.permute.xlu0 %741
      %743 = vrot.lane.b32.xlu0 %v628, 64
      %v744 = vpop.permute.xlu0 %743
      %745 = vrot.lane.b32.xlu0 %v627, 64
      %v746 = vpop.permute.xlu0 %745
      %747 = vrot.lane.b32.xlu0 %v626, 64
      %v748 = vpop.permute.xlu0 %747
      %749 = vrot.lane.b32.xlu0 %v625, 64
      %v750 = vpop.permute.xlu0 %749
      %751 = vrot.lane.b32.xlu0 %v624, 64
      %v752 = vpop.permute.xlu0 %751
      %753 = vrot.lane.b32.xlu0 %v623, 64
      %v754 = vpop.permute.xlu0 %753
      %755 = vrot.lane.b32.xlu0 %v622, 64
      %v756 = vpop.permute.xlu0 %755
      %757 = vrot.lane.b32.xlu0 %v621, 64
      %v758 = vpop.permute.xlu0 %757
      %759 = vrot.lane.b32.xlu0 %v620, 64
      %v760 = vpop.permute.xlu0 %759
      %761 = vrot.lane.b32.xlu0 %v619, 64
      %v762 = vpop.permute.xlu0 %761
      %763 = vrot.lane.b32.xlu0 %v618, 64
      %v764 = vpop.permute.xlu0 %763
      %765 = vrot.lane.b32.xlu0 %v617, 64
      %v766 = vpop.permute.xlu0 %765
      %767 = vrot.lane.b32.xlu0 %v616, 64
      %v768 = vpop.permute.xlu0 %767
      %769 = vrot.lane.b32.xlu0 %v615, 64
      %v770 = vpop.permute.xlu0 %769
      %771 = vrot.lane.b32.xlu0 %v614, 64
      %v772 = vpop.permute.xlu0 %771
      %773 = vrot.lane.b32.xlu0 %v613, 64
      %v774 = vpop.permute.xlu0 %773
      %775 = vrot.lane.b32.xlu0 %v612, 64
      %v776 = vpop.permute.xlu0 %775
      %777 = vrot.lane.b32.xlu0 %v611, 64
      %v778 = vpop.permute.xlu0 %777
      %779 = vrot.lane.b32.xlu0 %v610, 64
      %v780 = vpop.permute.xlu0 %779
      %781 = vrot.lane.b32.xlu0 %v609, 64
      %v782 = vpop.permute.xlu0 %781
      %783 = vrot.lane.b32.xlu0 %v630, 64
      %v784 = vpop.permute.xlu0 %783
      %vm807 = vcmask 261120
      %v808 = vsel %vm807, %v517, %v654
      %v809 = vsel %vm807, %v518, %v656
      %v810 = vsel %vm807, %v519, %v658
      %v811 = vsel %vm807, %v520, %v660
      %v812 = vsel %vm807, %v521, %v662
      %v813 = vsel %vm807, %v522, %v664
      %v814 = vsel %vm807, %v523, %v666
      %v815 = vsel %vm807, %v524, %v668
      %v816 = vsel %vm807, %v525, %v670
      %v817 = vsel %vm807, %v526, %v672
      %v818 = vsel %vm807, %v527, %v674
      %v819 = vsel %vm807, %v528, %v676
      %v820 = vsel %vm807, %v529, %v678
      %v821 = vsel %vm807, %v530, %v680
      %v822 = vsel %vm807, %v531, %v682
      %v823 = vsel %vm807, %v532, %v684
      %v824 = vsel %vm807, %v533, %v686
      %v825 = vsel %vm807, %v534, %v688
      %v826 = vsel %vm807, %v535, %v690
      %v827 = vsel %vm807, %v536, %v692
      %v828 = vsel %vm807, %v537, %v694
      %v829 = vsel %vm807, %v538, %v696
      %vm830 = vcmask 523264
      %v831 = vsel %vm830, %v808, %v742
      %v832 = vsel %vm830, %v809, %v744
      %v833 = vsel %vm830, %v810, %v746
      %v834 = vsel %vm830, %v811, %v748
      %v835 = vsel %vm830, %v812, %v750
      %v836 = vsel %vm830, %v813, %v752
      %v837 = vsel %vm830, %v814, %v754
      %v838 = vsel %vm830, %v815, %v756
      %v839 = vsel %vm830, %v816, %v758
      %v840 = vsel %vm830, %v817, %v760
      %v841 = vsel %vm830, %v818, %v762
      %v842 = vsel %vm830, %v819, %v764
      %v843 = vsel %vm830, %v820, %v766
      %v844 = vsel %vm830, %v821, %v768
      %v845 = vsel %vm830, %v822, %v770
      %v846 = vsel %vm830, %v823, %v772
      %v847 = vsel %vm830, %v824, %v774
      %v848 = vsel %vm830, %v825, %v776
      %v849 = vsel %vm830, %v826, %v778
      %v850 = vsel %vm830, %v827, %v780
      %v851 = vsel %vm830, %v828, %v782
      %v852 = vsel %vm830, %v829, %v784
      %v853 = vpack.c.bf16 %v832, %v831
      %v854 = vpack.c.bf16 %v834, %v833
      %v855 = vpack.c.bf16 %v836, %v835
      %v856 = vpack.c.bf16 %v838, %v837
      %v857 = vpack.c.bf16 %v840, %v839
      %v858 = vpack.c.bf16 %v842, %v841
      %v859 = vpack.c.bf16 %v844, %v843
      %v860 = vpack.c.bf16 %v846, %v845
      %v861 = vpack.c.bf16 %v848, %v847
      %v862 = vpack.c.bf16 %v850, %v849
      %v863 = vpack.c.bf16 %v852, %v851
      %v864 = vld [vmem:[%s2] sm:$0xf]
      %v865 = vld [vmem:[%s2 + $0x4] sm:$0xf]
      %v866 = vld [vmem:[%s2 + $0x8] sm:$0xf]
      %v867 = vld [vmem:[%s2 + $0xc] sm:$0xf]
      %v868 = vld [vmem:[%s2 + $0x10] sm:$0xf]
      %v869 = vld [vmem:[%s2 + $0x14] sm:$0xf]
      %v870 = vld [vmem:[%s2 + $0x18] sm:$0xf]
      %v871 = vld [vmem:[%s2 + $0x1c] sm:$0xf]
      %v872 = vld [vmem:[%s2 + $0x20] sm:$0xf]
      %v873 = vld [vmem:[%s2 + $0x24] sm:$0xf]
      %v874 = vld [vmem:[%s2 + $0x28] sm:$0xf]
      %v875 = vld [vmem:[%s2 + $0x2c] sm:$0xf]
      %s876 = scalar_lea.vmem %s2, 48
      %v877 = vld [vmem:[%s876] sm:$0xf]
      %v878 = vld [vmem:[%s876 + $0x4] sm:$0xf]
      %v879 = vld [vmem:[%s876 + $0x8] sm:$0xf]
      %v880 = vld [vmem:[%s876 + $0xc] sm:$0xf]
      %v881 = vld [vmem:[%s876 + $0x10] sm:$0xf]
      %v882 = vld [vmem:[%s876 + $0x14] sm:$0xf]
      %v883 = vld [vmem:[%s876 + $0x18] sm:$0xf]
      %v884 = vld [vmem:[%s876 + $0x1c] sm:$0xf]
      %v885 = vld [vmem:[%s876 + $0x20] sm:$0xf]
      %v886 = vld [vmem:[%s876 + $0x24] sm:$0xf]
      %v887 = vld [vmem:[%s876 + $0x28] sm:$0xf]
      %v888 = vld [vmem:[%s876 + $0x2c] sm:$0xf]
      %v901 = vunpack.c.l.b16 %v877
      %v902 = vunpack.c.l.b16 %v878
      %v903 = vunpack.c.l.b16 %v879
      %v904 = vunpack.c.l.b16 %v880
      %v905 = vunpack.c.l.b16 %v881
      %v906 = vunpack.c.l.b16 %v882
      %v907 = vunpack.c.l.b16 %v883
      %v908 = vunpack.c.l.b16 %v884
      %v909 = vunpack.c.l.b16 %v885
      %v910 = vunpack.c.l.b16 %v886
      %v911 = vunpack.c.l.b16 %v887
      %v912 = vunpack.c.l.b16 %v888
      %v913 = vpack.c.b16 %v902, %v901
      %v914 = vpack.c.b16 %v904, %v903
      %v915 = vpack.c.b16 %v906, %v905
      %v916 = vpack.c.b16 %v908, %v907
      %v917 = vpack.c.b16 %v910, %v909
      %v918 = vpack.c.b16 %v912, %v911
      %vm925 = vcmask 785408
      %v927 = vsel %vm925, %v854, 0
      %v930 = vsel %vm925, %v855, 0
      %v933 = vsel %vm925, %v856, 0
      %v936 = vsel %vm925, %v857, 0
      %v939 = vsel %vm925, %v858, 0
      %v942 = vsel %vm925, %v859, 0
      %v945 = vsel %vm925, %v860, 0
      %v948 = vsel %vm925, %v861, 0
      %v951 = vsel %vm925, %v862, 0
      %953 = vmatprep.subr.bf16.mxu0 0
      %954 = vmatpush1.bf16.msra.mxu0 0
      %955 = vmatprep.subr.bf16.mxu0 0
      %956 = vmatpush1.bf16.msra.mxu0 0
      %957 = vmatprep.subr.bf16.mxu0 0
      %958 = vmatpush1.bf16.msra.mxu0 %v918
      %959 = vmatprep.subr.bf16.mxu0 0
      %960 = vmatpush1.bf16.msra.mxu0 %v917
      %961 = vmatprep.subr.bf16.mxu0 0
      %962 = vmatpush1.bf16.msra.mxu0 %v916
      %963 = vmatprep.subr.bf16.mxu0 0
      %964 = vmatpush1.bf16.msra.mxu0 %v915
      %965 = vmatprep.subr.bf16.mxu0 0
      %966 = vmatpush1.bf16.msra.mxu0 %v914
      %967 = vmatprep.subr.bf16.mxu0 0
      %968 = vmatpush1.bf16.msra.mxu0 %v913
      %969 = vmatprep.subr.bf16.mxu0 0
      %970 = vmatpush2.bf16.msra.mxu0 0
      %971 = vmatprep.subr.bf16.mxu0 0
      %972 = vmatpush2.bf16.msra.mxu0 0
      %973 = vmatprep.subr.bf16.mxu0 0
      %974 = vmatpush2.bf16.msra.mxu0 0
      %975 = vmatprep.subr.bf16.mxu0 0
      %976 = vmatpush2.bf16.msra.mxu0 0
      %977 = vmatprep.subr.bf16.mxu0 0
      %978 = vmatpush2.bf16.msra.mxu0 0
      %979 = vmatprep.subr.bf16.mxu0 0
      %980 = vmatpush2.bf16.msra.mxu0 0
      %981 = vmatprep.subr.bf16.mxu0 0
      %982 = vmatpush2.bf16.msra.mxu0 0
      %983 = vmatprep.subr.bf16.mxu0 0
      %984 = vmatpush2.bf16.msra.mxu0 0
      %985 = vmatprep.mubr.bf16.mxu0 0
      %986 = vmatmul.mubr.bf16.gmra.mxu0 %v927
      %v987 = vpop.f32.mrf.mxu0
      %v988 = vadd.f32 0.0, %v987
      %v989 = vpop.f32.mrf.mxu0
      %v990 = vpop.f32.mrf.mxu0
      %v991 = vadd.f32 0.0, %v990
      %v992 = vpop.f32.mrf.mxu0
      %993 = vmatprep.mubr.bf16.mxu0 0
      %994 = vmatmul.mubr.bf16.gmra.mxu0 %v930
      %v995 = vpop.f32.mrf.mxu0
      %v996 = vadd.f32 0.0, %v995
      %v997 = vpop.f32.mrf.mxu0
      %v998 = vpop.f32.mrf.mxu0
      %v999 = vadd.f32 0.0, %v998
      %v1000 = vpop.f32.mrf.mxu0
      %1001 = vmatprep.mubr.bf16.mxu0 0
      %1002 = vmatmul.mubr.bf16.gmra.mxu0 %v933
      %v1003 = vpop.f32.mrf.mxu0
      %v1004 = vadd.f32 0.0, %v1003
      %v1005 = vpop.f32.mrf.mxu0
      %v1006 = vpop.f32.mrf.mxu0
      %v1007 = vadd.f32 0.0, %v1006
      %v1008 = vpop.f32.mrf.mxu0
      %1009 = vmatprep.mubr.bf16.mxu0 0
      %1010 = vmatmul.mubr.bf16.gmra.mxu0 %v936
      %v1011 = vpop.f32.mrf.mxu0
      %v1012 = vadd.f32 0.0, %v1011
      %v1013 = vpop.f32.mrf.mxu0
      %v1014 = vpop.f32.mrf.mxu0
      %v1015 = vadd.f32 0.0, %v1014
      %v1016 = vpop.f32.mrf.mxu0
      %1017 = vmatprep.mubr.bf16.mxu0 0
      %1018 = vmatmul.mubr.bf16.gmra.mxu0 %v939
      %v1019 = vpop.f32.mrf.mxu0
      %v1020 = vadd.f32 0.0, %v1019
      %v1021 = vpop.f32.mrf.mxu0
      %v1022 = vpop.f32.mrf.mxu0
      %v1023 = vadd.f32 0.0, %v1022
      %v1024 = vpop.f32.mrf.mxu0
      %1025 = vmatprep.mubr.bf16.mxu0 0
      %1026 = vmatmul.mubr.bf16.gmra.mxu0 %v942
      %v1027 = vpop.f32.mrf.mxu0
      %v1028 = vadd.f32 0.0, %v1027
      %v1029 = vpop.f32.mrf.mxu0
      %v1030 = vpop.f32.mrf.mxu0
      %v1031 = vadd.f32 0.0, %v1030
      %v1032 = vpop.f32.mrf.mxu0
      %1033 = vmatprep.mubr.bf16.mxu0 0
      %1034 = vmatmul.mubr.bf16.gmra.mxu0 %v945
      %v1035 = vpop.f32.mrf.mxu0
      %v1036 = vadd.f32 0.0, %v1035
      %v1037 = vpop.f32.mrf.mxu0
      %v1038 = vpop.f32.mrf.mxu0
      %v1039 = vadd.f32 0.0, %v1038
      %v1040 = vpop.f32.mrf.mxu0
      %1041 = vmatprep.mubr.bf16.mxu0 0
      %1042 = vmatmul.mubr.bf16.gmra.mxu0 %v948
      %v1043 = vpop.f32.mrf.mxu0
      %v1044 = vadd.f32 0.0, %v1043
      %v1045 = vpop.f32.mrf.mxu0
      %v1046 = vpop.f32.mrf.mxu0
      %v1047 = vadd.f32 0.0, %v1046
      %v1048 = vpop.f32.mrf.mxu0
      %1049 = vmatprep.mubr.bf16.mxu0 0
      %1050 = vmatmul.mubr.bf16.gmra.mxu0 %v951
      %v1051 = vpop.f32.mrf.mxu0
      %v1052 = vadd.f32 0.0, %v1051
      %v1053 = vpop.f32.mrf.mxu0
      %v1054 = vpop.f32.mrf.mxu0
      %v1055 = vadd.f32 0.0, %v1054
      %v1056 = vpop.f32.mrf.mxu0
      %1057 = vdwg.mxu0
      %v1070 = vunpack.c.l.b16 %v864
      %v1071 = vunpack.c.l.b16 %v865
      %v1072 = vunpack.c.l.b16 %v866
      %v1073 = vunpack.c.l.b16 %v867
      %v1074 = vunpack.c.l.b16 %v868
      %v1075 = vunpack.c.l.b16 %v869
      %v1076 = vunpack.c.l.b16 %v870
      %v1077 = vunpack.c.l.b16 %v871
      %v1078 = vunpack.c.l.b16 %v872
      %v1079 = vunpack.c.l.b16 %v873
      %v1080 = vunpack.c.l.b16 %v874
      %v1081 = vunpack.c.l.b16 %v875
      %v1082 = vpack.c.b16 %v1071, %v1070
      %v1083 = vpack.c.b16 %v1073, %v1072
      %v1084 = vpack.c.b16 %v1075, %v1074
      %v1085 = vpack.c.b16 %v1077, %v1076
      %v1086 = vpack.c.b16 %v1079, %v1078
      %v1087 = vpack.c.b16 %v1081, %v1080
      %v1095 = vsel %vm925, %v853, 0
      %1097 = vmatprep.subr.bf16.mxu0 0
      %1098 = vmatpush1.bf16.msra.mxu0 0
      %1099 = vmatprep.subr.bf16.mxu0 0
      %1100 = vmatpush1.bf16.msra.mxu0 0
      %1101 = vmatprep.subr.bf16.mxu0 0
      %1102 = vmatpush1.bf16.msra.mxu0 %v1087
      %1103 = vmatprep.subr.bf16.mxu0 0
      %1104 = vmatpush1.bf16.msra.mxu0 %v1086
      %1105 = vmatprep.subr.bf16.mxu0 0
      %1106 = vmatpush1.bf16.msra.mxu0 %v1085
      %1107 = vmatprep.subr.bf16.mxu0 0
      %1108 = vmatpush1.bf16.msra.mxu0 %v1084
      %1109 = vmatprep.subr.bf16.mxu0 0
      %1110 = vmatpush1.bf16.msra.mxu0 %v1083
      %1111 = vmatprep.subr.bf16.mxu0 0
      %1112 = vmatpush1.bf16.msra.mxu0 %v1082
      %1113 = vmatprep.subr.bf16.mxu0 0
      %1114 = vmatpush2.bf16.msra.mxu0 0
      %1115 = vmatprep.subr.bf16.mxu0 0
      %1116 = vmatpush2.bf16.msra.mxu0 0
      %1117 = vmatprep.subr.bf16.mxu0 0
      %1118 = vmatpush2.bf16.msra.mxu0 0
      %1119 = vmatprep.subr.bf16.mxu0 0
      %1120 = vmatpush2.bf16.msra.mxu0 0
      %1121 = vmatprep.subr.bf16.mxu0 0
      %1122 = vmatpush2.bf16.msra.mxu0 0
      %1123 = vmatprep.subr.bf16.mxu0 0
      %1124 = vmatpush2.bf16.msra.mxu0 0
      %1125 = vmatprep.subr.bf16.mxu0 0
      %1126 = vmatpush2.bf16.msra.mxu0 0
      %1127 = vmatprep.subr.bf16.mxu0 0
      %1128 = vmatpush2.bf16.msra.mxu0 0
      %1129 = vmatprep.mubr.bf16.mxu0 0
      %1130 = vmatmul.mubr.bf16.gmra.mxu0 %v1095
      %v1131 = vpop.f32.mrf.mxu0
      %v1132 = vadd.f32 %v988, %v1131
      %v1133 = vpop.f32.mrf.mxu0
      %v1134 = vpop.f32.mrf.mxu0
      %v1135 = vadd.f32 %v991, %v1134
      %v1136 = vpop.f32.mrf.mxu0
      %1137 = vmatprep.mubr.bf16.mxu0 0
      %1138 = vmatmul.mubr.bf16.gmra.mxu0 %v927
      %v1139 = vpop.f32.mrf.mxu0
      %v1140 = vadd.f32 %v996, %v1139
      %v1141 = vpop.f32.mrf.mxu0
      %v1142 = vpop.f32.mrf.mxu0
      %v1143 = vadd.f32 %v999, %v1142
      %v1144 = vpop.f32.mrf.mxu0
      %1145 = vmatprep.mubr.bf16.mxu0 0
      %1146 = vmatmul.mubr.bf16.gmra.mxu0 %v930
      %v1147 = vpop.f32.mrf.mxu0
      %v1148 = vadd.f32 %v1004, %v1147
      %v1149 = vpop.f32.mrf.mxu0
      %v1150 = vpop.f32.mrf.mxu0
      %v1151 = vadd.f32 %v1007, %v1150
      %v1152 = vpop.f32.mrf.mxu0
      %1153 = vmatprep.mubr.bf16.mxu0 0
      %1154 = vmatmul.mubr.bf16.gmra.mxu0 %v933
      %v1155 = vpop.f32.mrf.mxu0
      %v1156 = vadd.f32 %v1012, %v1155
      %v1157 = vpop.f32.mrf.mxu0
      %v1158 = vpop.f32.mrf.mxu0
      %v1159 = vadd.f32 %v1015, %v1158
      %v1160 = vpop.f32.mrf.mxu0
      %1161 = vmatprep.mubr.bf16.mxu0 0
      %1162 = vmatmul.mubr.bf16.gmra.mxu0 %v936
      %v1163 = vpop.f32.mrf.mxu0
      %v1164 = vadd.f32 %v1020, %v1163
      %v1165 = vpop.f32.mrf.mxu0
      %v1166 = vpop.f32.mrf.mxu0
      %v1167 = vadd.f32 %v1023, %v1166
      %v1168 = vpop.f32.mrf.mxu0
      %1169 = vmatprep.mubr.bf16.mxu0 0
      %1170 = vmatmul.mubr.bf16.gmra.mxu0 %v939
      %v1171 = vpop.f32.mrf.mxu0
      %v1172 = vadd.f32 %v1028, %v1171
      %v1173 = vpop.f32.mrf.mxu0
      %v1174 = vpop.f32.mrf.mxu0
      %v1175 = vadd.f32 %v1031, %v1174
      %v1176 = vpop.f32.mrf.mxu0
      %1177 = vmatprep.mubr.bf16.mxu0 0
      %1178 = vmatmul.mubr.bf16.gmra.mxu0 %v942
      %v1179 = vpop.f32.mrf.mxu0
      %v1180 = vadd.f32 %v1036, %v1179
      %v1181 = vpop.f32.mrf.mxu0
      %v1182 = vpop.f32.mrf.mxu0
      %v1183 = vadd.f32 %v1039, %v1182
      %v1184 = vpop.f32.mrf.mxu0
      %1185 = vmatprep.mubr.bf16.mxu0 0
      %1186 = vmatmul.mubr.bf16.gmra.mxu0 %v945
      %v1187 = vpop.f32.mrf.mxu0
      %v1188 = vadd.f32 %v1044, %v1187
      %v1189 = vpop.f32.mrf.mxu0
      %v1190 = vpop.f32.mrf.mxu0
      %v1191 = vadd.f32 %v1047, %v1190
      %v1192 = vpop.f32.mrf.mxu0
      %1193 = vmatprep.mubr.bf16.mxu0 0
      %1194 = vmatmul.mubr.bf16.gmra.mxu0 %v948
      %v1195 = vpop.f32.mrf.mxu0
      %v1196 = vadd.f32 %v1052, %v1195
      %v1197 = vpop.f32.mrf.mxu0
      %v1198 = vpop.f32.mrf.mxu0
      %v1199 = vadd.f32 %v1055, %v1198
      %v1200 = vpop.f32.mrf.mxu0
      %1201 = vdwg.mxu0
      %s1202 = scalar_lea.vmem %s2, 96
      %v1203 = vld [vmem:[%s1202] sm:$0xf]
      %v1204 = vld [vmem:[%s1202 + $0x4] sm:$0xf]
      %v1205 = vld [vmem:[%s1202 + $0x8] sm:$0xf]
      %v1206 = vld [vmem:[%s1202 + $0xc] sm:$0xf]
      %v1207 = vld [vmem:[%s1202 + $0x10] sm:$0xf]
      %v1208 = vld [vmem:[%s1202 + $0x14] sm:$0xf]
      %v1209 = vld [vmem:[%s1202 + $0x18] sm:$0xf]
      %v1210 = vld [vmem:[%s1202 + $0x1c] sm:$0xf]
      %v1211 = vld [vmem:[%s1202 + $0x20] sm:$0xf]
      %v1212 = vld [vmem:[%s1202 + $0x24] sm:$0xf]
      %v1213 = vld [vmem:[%s1202 + $0x28] sm:$0xf]
      %v1214 = vld [vmem:[%s1202 + $0x2c] sm:$0xf]
      %v1227 = vunpack.c.l.b16 %v1203
      %v1228 = vunpack.c.l.b16 %v1204
      %v1229 = vunpack.c.l.b16 %v1205
      %v1230 = vunpack.c.l.b16 %v1206
      %v1231 = vunpack.c.l.b16 %v1207
      %v1232 = vunpack.c.l.b16 %v1208
      %v1233 = vunpack.c.l.b16 %v1209
      %v1234 = vunpack.c.l.b16 %v1210
      %v1235 = vunpack.c.l.b16 %v1211
      %v1236 = vunpack.c.l.b16 %v1212
      %v1237 = vunpack.c.l.b16 %v1213
      %v1238 = vunpack.c.l.b16 %v1214
      %v1239 = vpack.c.b16 %v1228, %v1227
      %v1240 = vpack.c.b16 %v1230, %v1229
      %v1241 = vpack.c.b16 %v1232, %v1231
      %v1242 = vpack.c.b16 %v1234, %v1233
      %v1243 = vpack.c.b16 %v1236, %v1235
      %v1244 = vpack.c.b16 %v1238, %v1237
      %v1252 = vsel %vm925, %v863, 0
      %1254 = vmatprep.subr.bf16.mxu0 0
      %1255 = vmatpush1.bf16.msra.mxu0 0
      %1256 = vmatprep.subr.bf16.mxu0 0
      %1257 = vmatpush1.bf16.msra.mxu0 0
      %1258 = vmatprep.subr.bf16.mxu0 0
      %1259 = vmatpush1.bf16.msra.mxu0 %v1244
      %1260 = vmatprep.subr.bf16.mxu0 0
      %1261 = vmatpush1.bf16.msra.mxu0 %v1243
      %1262 = vmatprep.subr.bf16.mxu0 0
      %1263 = vmatpush1.bf16.msra.mxu0 %v1242
      %1264 = vmatprep.subr.bf16.mxu0 0
      %1265 = vmatpush1.bf16.msra.mxu0 %v1241
      %1266 = vmatprep.subr.bf16.mxu0 0
      %1267 = vmatpush1.bf16.msra.mxu0 %v1240
      %1268 = vmatprep.subr.bf16.mxu0 0
      %1269 = vmatpush1.bf16.msra.mxu0 %v1239
      %1270 = vmatprep.subr.bf16.mxu0 0
      %1271 = vmatpush2.bf16.msra.mxu0 0
      %1272 = vmatprep.subr.bf16.mxu0 0
      %1273 = vmatpush2.bf16.msra.mxu0 0
      %1274 = vmatprep.subr.bf16.mxu0 0
      %1275 = vmatpush2.bf16.msra.mxu0 0
      %1276 = vmatprep.subr.bf16.mxu0 0
      %1277 = vmatpush2.bf16.msra.mxu0 0
      %1278 = vmatprep.subr.bf16.mxu0 0
      %1279 = vmatpush2.bf16.msra.mxu0 0
      %1280 = vmatprep.subr.bf16.mxu0 0
      %1281 = vmatpush2.bf16.msra.mxu0 0
      %1282 = vmatprep.subr.bf16.mxu0 0
      %1283 = vmatpush2.bf16.msra.mxu0 0
      %1284 = vmatprep.subr.bf16.mxu0 0
      %1285 = vmatpush2.bf16.msra.mxu0 0
      %1286 = vmatprep.mubr.bf16.mxu0 0
      %1287 = vmatmul.mubr.bf16.gmra.mxu0 %v930
      %v1288 = vpop.f32.mrf.mxu0
      %v1289 = vadd.f32 0.0, %v1288
      %v1290 = vpop.f32.mrf.mxu0
      %v1291 = vpop.f32.mrf.mxu0
      %v1292 = vadd.f32 0.0, %v1291
      %v1293 = vpop.f32.mrf.mxu0
      %1294 = vmatprep.mubr.bf16.mxu0 0
      %1295 = vmatmul.mubr.bf16.gmra.mxu0 %v933
      %v1296 = vpop.f32.mrf.mxu0
      %v1297 = vadd.f32 0.0, %v1296
      %v1298 = vpop.f32.mrf.mxu0
      %v1299 = vpop.f32.mrf.mxu0
      %v1300 = vadd.f32 0.0, %v1299
      %v1301 = vpop.f32.mrf.mxu0
      %1302 = vmatprep.mubr.bf16.mxu0 0
      %1303 = vmatmul.mubr.bf16.gmra.mxu0 %v936
      %v1304 = vpop.f32.mrf.mxu0
      %v1305 = vadd.f32 0.0, %v1304
      %v1306 = vpop.f32.mrf.mxu0
      %v1307 = vpop.f32.mrf.mxu0
      %v1308 = vadd.f32 0.0, %v1307
      %v1309 = vpop.f32.mrf.mxu0
      %1310 = vmatprep.mubr.bf16.mxu0 0
      %1311 = vmatmul.mubr.bf16.gmra.mxu0 %v939
      %v1312 = vpop.f32.mrf.mxu0
      %v1313 = vadd.f32 0.0, %v1312
      %v1314 = vpop.f32.mrf.mxu0
      %v1315 = vpop.f32.mrf.mxu0
      %v1316 = vadd.f32 0.0, %v1315
      %v1317 = vpop.f32.mrf.mxu0
      %1318 = vmatprep.mubr.bf16.mxu0 0
      %1319 = vmatmul.mubr.bf16.gmra.mxu0 %v942
      %v1320 = vpop.f32.mrf.mxu0
      %v1321 = vadd.f32 0.0, %v1320
      %v1322 = vpop.f32.mrf.mxu0
      %v1323 = vpop.f32.mrf.mxu0
      %v1324 = vadd.f32 0.0, %v1323
      %v1325 = vpop.f32.mrf.mxu0
      %1326 = vmatprep.mubr.bf16.mxu0 0
      %1327 = vmatmul.mubr.bf16.gmra.mxu0 %v945
      %v1328 = vpop.f32.mrf.mxu0
      %v1329 = vadd.f32 0.0, %v1328
      %v1330 = vpop.f32.mrf.mxu0
      %v1331 = vpop.f32.mrf.mxu0
      %v1332 = vadd.f32 0.0, %v1331
      %v1333 = vpop.f32.mrf.mxu0
      %1334 = vmatprep.mubr.bf16.mxu0 0
      %1335 = vmatmul.mubr.bf16.gmra.mxu0 %v948
      %v1336 = vpop.f32.mrf.mxu0
      %v1337 = vadd.f32 0.0, %v1336
      %v1338 = vpop.f32.mrf.mxu0
      %v1339 = vpop.f32.mrf.mxu0
      %v1340 = vadd.f32 0.0, %v1339
      %v1341 = vpop.f32.mrf.mxu0
      %1342 = vmatprep.mubr.bf16.mxu0 0
      %1343 = vmatmul.mubr.bf16.gmra.mxu0 %v951
      %v1344 = vpop.f32.mrf.mxu0
      %v1345 = vadd.f32 0.0, %v1344
      %v1346 = vpop.f32.mrf.mxu0
      %v1347 = vpop.f32.mrf.mxu0
      %v1348 = vadd.f32 0.0, %v1347
      %v1349 = vpop.f32.mrf.mxu0
      %1350 = vmatprep.mubr.bf16.mxu0 0
      %1351 = vmatmul.mubr.bf16.gmra.mxu0 %v1252
      %v1352 = vpop.f32.mrf.mxu0
      %v1353 = vadd.f32 0.0, %v1352
      %v1354 = vpop.f32.mrf.mxu0
      %v1355 = vpop.f32.mrf.mxu0
      %v1356 = vadd.f32 0.0, %v1355
      %v1357 = vpop.f32.mrf.mxu0
      %1358 = vdwg.mxu0
      %v1359 = vadd.f32 %v1132, %v1289
      %v1360 = vadd.f32 %v1135, %v1292
      %v1361 = vadd.f32 %v1140, %v1297
      %v1362 = vadd.f32 %v1143, %v1300
      %v1363 = vadd.f32 %v1148, %v1305
      %v1364 = vadd.f32 %v1151, %v1308
      %v1365 = vadd.f32 %v1156, %v1313
      %v1366 = vadd.f32 %v1159, %v1316
      %v1367 = vadd.f32 %v1164, %v1321
      %v1368 = vadd.f32 %v1167, %v1324
      %v1369 = vadd.f32 %v1172, %v1329
      %v1370 = vadd.f32 %v1175, %v1332
      %v1371 = vadd.f32 %v1180, %v1337
      %v1372 = vadd.f32 %v1183, %v1340
      %v1373 = vadd.f32 %v1188, %v1345
      %v1374 = vadd.f32 %v1191, %v1348
      %v1375 = vadd.f32 %v1196, %v1353
      %v1376 = vadd.f32 %v1199, %v1356
      %v1377 = vld [vmem:[%s5 + $0x1] sm:$0x1]
      %v1378 = vlaneseq
      %v1379 = vshrl.u32 %v1378, 7
      %v1380 = vsub.s32 0, %v1379
      %v1381 = vrot.slane %v1377, %v1380
      %v1382 = vadd.f32 %v1359, %v1381
      %v1383 = vadd.f32 %v1360, %v1381
      %v1384 = vadd.f32 %v1361, %v1381
      %v1385 = vadd.f32 %v1362, %v1381
      %v1386 = vadd.f32 %v1363, %v1381
      %v1387 = vadd.f32 %v1364, %v1381
      %v1388 = vadd.f32 %v1365, %v1381
      %v1389 = vadd.f32 %v1366, %v1381
      %v1390 = vadd.f32 %v1367, %v1381
      %v1391 = vadd.f32 %v1368, %v1381
      %v1392 = vadd.f32 %v1369, %v1381
      %v1393 = vadd.f32 %v1370, %v1381
      %v1394 = vadd.f32 %v1371, %v1381
      %v1395 = vadd.f32 %v1372, %v1381
      %v1396 = vadd.f32 %v1373, %v1381
      %v1397 = vadd.f32 %v1374, %v1381
      %v1398 = vadd.f32 %v1375, %v1381
      %v1399 = vadd.f32 %v1376, %v1381
      %v1400 = vmax.f32 %v1382, 0.0
      %v1401 = vmax.f32 %v1383, 0.0
      %v1402 = vmax.f32 %v1384, 0.0
      %v1403 = vmax.f32 %v1385, 0.0
      %v1404 = vmax.f32 %v1386, 0.0
      %v1405 = vmax.f32 %v1387, 0.0
      %v1406 = vmax.f32 %v1388, 0.0
      %v1407 = vmax.f32 %v1389, 0.0
      %v1408 = vmax.f32 %v1390, 0.0
      %v1409 = vmax.f32 %v1391, 0.0
      %v1410 = vmax.f32 %v1392, 0.0
      %v1411 = vmax.f32 %v1393, 0.0
      %v1412 = vmax.f32 %v1394, 0.0
      %v1413 = vmax.f32 %v1395, 0.0
      %v1414 = vmax.f32 %v1396, 0.0
      %v1415 = vmax.f32 %v1397, 0.0
      %v1416 = vmax.f32 %v1398, 0.0
      %v1417 = vmax.f32 %v1399, 0.0
      %v1418 = vrot.slane %v1400, 1
      %v1419 = vrot.slane %v1401, 1
      %v1420 = vrot.slane %v1402, 1
      %v1421 = vrot.slane %v1403, 1
      %v1422 = vrot.slane %v1404, 1
      %v1423 = vrot.slane %v1405, 1
      %v1424 = vrot.slane %v1406, 1
      %v1425 = vrot.slane %v1407, 1
      %v1426 = vrot.slane %v1408, 1
      %v1427 = vrot.slane %v1409, 1
      %v1428 = vrot.slane %v1410, 1
      %v1429 = vrot.slane %v1411, 1
      %v1430 = vrot.slane %v1412, 1
      %v1431 = vrot.slane %v1413, 1
      %v1432 = vrot.slane %v1414, 1
      %v1433 = vrot.slane %v1415, 1
      %v1434 = vrot.slane %v1416, 1
      %v1435 = vrot.slane %v1417, 1
      %v1436 = vsel %vm563, %v1434, %v1435
      %v1437 = vsel %vm563, %v1433, %v1434
      %v1438 = vsel %vm563, %v1432, %v1433
      %v1439 = vsel %vm563, %v1431, %v1432
      %v1440 = vsel %vm563, %v1430, %v1431
      %v1441 = vsel %vm563, %v1429, %v1430
      %v1442 = vsel %vm563, %v1428, %v1429
      %v1443 = vsel %vm563, %v1427, %v1428
      %v1444 = vsel %vm563, %v1426, %v1427
      %v1445 = vsel %vm563, %v1425, %v1426
      %v1446 = vsel %vm563, %v1424, %v1425
      %v1447 = vsel %vm563, %v1423, %v1424
      %v1448 = vsel %vm563, %v1422, %v1423
      %v1449 = vsel %vm563, %v1421, %v1422
      %v1450 = vsel %vm563, %v1420, %v1421
      %v1451 = vsel %vm563, %v1419, %v1420
      %v1452 = vsel %vm563, %v1418, %v1419
      %v1453 = vsel %vm563, %v1435, %v1418
      %v1454 = vrot.slane %v1400, 2
      %v1455 = vrot.slane %v1401, 2
      %v1456 = vrot.slane %v1402, 2
      %v1457 = vrot.slane %v1403, 2
      %v1458 = vrot.slane %v1404, 2
      %v1459 = vrot.slane %v1405, 2
      %v1460 = vrot.slane %v1406, 2
      %v1461 = vrot.slane %v1407, 2
      %v1462 = vrot.slane %v1408, 2
      %v1463 = vrot.slane %v1409, 2
      %v1464 = vrot.slane %v1410, 2
      %v1465 = vrot.slane %v1411, 2
      %v1466 = vrot.slane %v1412, 2
      %v1467 = vrot.slane %v1413, 2
      %v1468 = vrot.slane %v1414, 2
      %v1469 = vrot.slane %v1415, 2
      %v1470 = vrot.slane %v1416, 2
      %v1471 = vrot.slane %v1417, 2
      %v1472 = vsel %vm608, %v1470, %v1471
      %v1473 = vsel %vm608, %v1469, %v1470
      %v1474 = vsel %vm608, %v1468, %v1469
      %v1475 = vsel %vm608, %v1467, %v1468
      %v1476 = vsel %vm608, %v1466, %v1467
      %v1477 = vsel %vm608, %v1465, %v1466
      %v1478 = vsel %vm608, %v1464, %v1465
      %v1479 = vsel %vm608, %v1463, %v1464
      %v1480 = vsel %vm608, %v1462, %v1463
      %v1481 = vsel %vm608, %v1461, %v1462
      %v1482 = vsel %vm608, %v1460, %v1461
      %v1483 = vsel %vm608, %v1459, %v1460
      %v1484 = vsel %vm608, %v1458, %v1459
      %v1485 = vsel %vm608, %v1457, %v1458
      %v1486 = vsel %vm608, %v1456, %v1457
      %v1487 = vsel %vm608, %v1455, %v1456
      %v1488 = vsel %vm608, %v1454, %v1455
      %v1489 = vsel %vm608, %v1471, %v1454
      %1508 = vrot.lane.b32.xlu0 %v1452, 32
      %v1509 = vpop.permute.xlu0 %1508
      %1510 = vrot.lane.b32.xlu0 %v1451, 32
      %v1511 = vpop.permute.xlu0 %1510
      %1512 = vrot.lane.b32.xlu0 %v1450, 32
      %v1513 = vpop.permute.xlu0 %1512
      %1514 = vrot.lane.b32.xlu0 %v1449, 32
      %v1515 = vpop.permute.xlu0 %1514
      %1516 = vrot.lane.b32.xlu0 %v1448, 32
      %v1517 = vpop.permute.xlu0 %1516
      %1518 = vrot.lane.b32.xlu0 %v1447, 32
      %v1519 = vpop.permute.xlu0 %1518
      %1520 = vrot.lane.b32.xlu0 %v1446, 32
      %v1521 = vpop.permute.xlu0 %1520
      %1522 = vrot.lane.b32.xlu0 %v1445, 32
      %v1523 = vpop.permute.xlu0 %1522
      %1524 = vrot.lane.b32.xlu0 %v1444, 32
      %v1525 = vpop.permute.xlu0 %1524
      %1526 = vrot.lane.b32.xlu0 %v1443, 32
      %v1527 = vpop.permute.xlu0 %1526
      %1528 = vrot.lane.b32.xlu0 %v1442, 32
      %v1529 = vpop.permute.xlu0 %1528
      %1530 = vrot.lane.b32.xlu0 %v1441, 32
      %v1531 = vpop.permute.xlu0 %1530
      %1532 = vrot.lane.b32.xlu0 %v1440, 32
      %v1533 = vpop.permute.xlu0 %1532
      %1534 = vrot.lane.b32.xlu0 %v1439, 32
      %v1535 = vpop.permute.xlu0 %1534
      %1536 = vrot.lane.b32.xlu0 %v1438, 32
      %v1537 = vpop.permute.xlu0 %1536
      %1538 = vrot.lane.b32.xlu0 %v1437, 32
      %v1539 = vpop.permute.xlu0 %1538
      %1540 = vrot.lane.b32.xlu0 %v1436, 32
      %v1541 = vpop.permute.xlu0 %1540
      %1542 = vrot.lane.b32.xlu0 %v1453, 32
      %v1543 = vpop.permute.xlu0 %1542
      %1580 = vrot.lane.b32.xlu0 %v1488, 64
      %v1581 = vpop.permute.xlu0 %1580
      %1582 = vrot.lane.b32.xlu0 %v1487, 64
      %v1583 = vpop.permute.xlu0 %1582
      %1584 = vrot.lane.b32.xlu0 %v1486, 64
      %v1585 = vpop.permute.xlu0 %1584
      %1586 = vrot.lane.b32.xlu0 %v1485, 64
      %v1587 = vpop.permute.xlu0 %1586
      %1588 = vrot.lane.b32.xlu0 %v1484, 64
      %v1589 = vpop.permute.xlu0 %1588
      %1590 = vrot.lane.b32.xlu0 %v1483, 64
      %v1591 = vpop.permute.xlu0 %1590
      %1592 = vrot.lane.b32.xlu0 %v1482, 64
      %v1593 = vpop.permute.xlu0 %1592
      %1594 = vrot.lane.b32.xlu0 %v1481, 64
      %v1595 = vpop.permute.xlu0 %1594
      %1596 = vrot.lane.b32.xlu0 %v1480, 64
      %v1597 = vpop.permute.xlu0 %1596
      %1598 = vrot.lane.b32.xlu0 %v1479, 64
      %v1599 = vpop.permute.xlu0 %1598
      %1600 = vrot.lane.b32.xlu0 %v1478, 64
      %v1601 = vpop.permute.xlu0 %1600
      %1602 = vrot.lane.b32.xlu0 %v1477, 64
      %v1603 = vpop.permute.xlu0 %1602
      %1604 = vrot.lane.b32.xlu0 %v1476, 64
      %v1605 = vpop.permute.xlu0 %1604
      %1606 = vrot.lane.b32.xlu0 %v1475, 64
      %v1607 = vpop.permute.xlu0 %1606
      %1608 = vrot.lane.b32.xlu0 %v1474, 64
      %v1609 = vpop.permute.xlu0 %1608
      %1610 = vrot.lane.b32.xlu0 %v1473, 64
      %v1611 = vpop.permute.xlu0 %1610
      %1612 = vrot.lane.b32.xlu0 %v1472, 64
      %v1613 = vpop.permute.xlu0 %1612
      %1614 = vrot.lane.b32.xlu0 %v1489, 64
      %v1615 = vpop.permute.xlu0 %1614
      %v1634 = vsel %vm807, %v1400, %v1509
      %v1635 = vsel %vm807, %v1401, %v1511
      %v1636 = vsel %vm807, %v1402, %v1513
      %v1637 = vsel %vm807, %v1403, %v1515
      %v1638 = vsel %vm807, %v1404, %v1517
      %v1639 = vsel %vm807, %v1405, %v1519
      %v1640 = vsel %vm807, %v1406, %v1521
      %v1641 = vsel %vm807, %v1407, %v1523
      %v1642 = vsel %vm807, %v1408, %v1525
      %v1643 = vsel %vm807, %v1409, %v1527
      %v1644 = vsel %vm807, %v1410, %v1529
      %v1645 = vsel %vm807, %v1411, %v1531
      %v1646 = vsel %vm807, %v1412, %v1533
      %v1647 = vsel %vm807, %v1413, %v1535
      %v1648 = vsel %vm807, %v1414, %v1537
      %v1649 = vsel %vm807, %v1415, %v1539
      %v1650 = vsel %vm807, %v1416, %v1541
      %v1651 = vsel %vm807, %v1417, %v1543
      %v1652 = vsel %vm830, %v1634, %v1581
      %v1653 = vsel %vm830, %v1635, %v1583
      %v1654 = vsel %vm830, %v1636, %v1585
      %v1655 = vsel %vm830, %v1637, %v1587
      %v1656 = vsel %vm830, %v1638, %v1589
      %v1657 = vsel %vm830, %v1639, %v1591
      %v1658 = vsel %vm830, %v1640, %v1593
      %v1659 = vsel %vm830, %v1641, %v1595
      %v1660 = vsel %vm830, %v1642, %v1597
      %v1661 = vsel %vm830, %v1643, %v1599
      %v1662 = vsel %vm830, %v1644, %v1601
      %v1663 = vsel %vm830, %v1645, %v1603
      %v1664 = vsel %vm830, %v1646, %v1605
      %v1665 = vsel %vm830, %v1647, %v1607
      %v1666 = vsel %vm830, %v1648, %v1609
      %v1667 = vsel %vm830, %v1649, %v1611
      %v1668 = vsel %vm830, %v1650, %v1613
      %v1669 = vsel %vm830, %v1651, %v1615
      %v1670 = vpack.c.bf16 %v1653, %v1652
      %v1671 = vpack.c.bf16 %v1655, %v1654
      %v1672 = vpack.c.bf16 %v1657, %v1656
      %v1673 = vpack.c.bf16 %v1659, %v1658
      %v1674 = vpack.c.bf16 %v1661, %v1660
      %v1675 = vpack.c.bf16 %v1663, %v1662
      %v1676 = vpack.c.bf16 %v1665, %v1664
      %v1677 = vpack.c.bf16 %v1667, %v1666
      %v1678 = vpack.c.bf16 %v1669, %v1668
      %v1679 = vld [vmem:[%s3] sm:$0xf]
      %v1680 = vld [vmem:[%s3 + $0x4] sm:$0xf]
      %v1681 = vld [vmem:[%s3 + $0x8] sm:$0xf]
      %v1682 = vld [vmem:[%s3 + $0xc] sm:$0xf]
      %v1683 = vld [vmem:[%s3 + $0x10] sm:$0xf]
      %v1684 = vld [vmem:[%s3 + $0x14] sm:$0xf]
      %v1685 = vld [vmem:[%s3 + $0x18] sm:$0xf]
      %v1686 = vld [vmem:[%s3 + $0x1c] sm:$0xf]
      %v1687 = vld [vmem:[%s3 + $0x20] sm:$0xf]
      %v1688 = vld [vmem:[%s3 + $0x24] sm:$0xf]
      %v1689 = vld [vmem:[%s3 + $0x28] sm:$0xf]
      %v1690 = vld [vmem:[%s3 + $0x2c] sm:$0xf]
      %s1691 = scalar_lea.vmem %s3, 48
      %v1692 = vld [vmem:[%s1691] sm:$0xf]
      %v1693 = vld [vmem:[%s1691 + $0x4] sm:$0xf]
      %v1694 = vld [vmem:[%s1691 + $0x8] sm:$0xf]
      %v1695 = vld [vmem:[%s1691 + $0xc] sm:$0xf]
      %v1696 = vld [vmem:[%s1691 + $0x10] sm:$0xf]
      %v1697 = vld [vmem:[%s1691 + $0x14] sm:$0xf]
      %v1698 = vld [vmem:[%s1691 + $0x18] sm:$0xf]
      %v1699 = vld [vmem:[%s1691 + $0x1c] sm:$0xf]
      %v1700 = vld [vmem:[%s1691 + $0x20] sm:$0xf]
      %v1701 = vld [vmem:[%s1691 + $0x24] sm:$0xf]
      %v1702 = vld [vmem:[%s1691 + $0x28] sm:$0xf]
      %v1703 = vld [vmem:[%s1691 + $0x2c] sm:$0xf]
      %v1716 = vunpack.c.l.b16 %v1692
      %v1717 = vunpack.c.l.b16 %v1693
      %v1718 = vunpack.c.l.b16 %v1694
      %v1719 = vunpack.c.l.b16 %v1695
      %v1720 = vunpack.c.l.b16 %v1696
      %v1721 = vunpack.c.l.b16 %v1697
      %v1722 = vunpack.c.l.b16 %v1698
      %v1723 = vunpack.c.l.b16 %v1699
      %v1724 = vunpack.c.l.b16 %v1700
      %v1725 = vunpack.c.l.b16 %v1701
      %v1726 = vunpack.c.l.b16 %v1702
      %v1727 = vunpack.c.l.b16 %v1703
      %v1728 = vpack.c.b16 %v1717, %v1716
      %v1729 = vpack.c.b16 %v1719, %v1718
      %v1730 = vpack.c.b16 %v1721, %v1720
      %v1731 = vpack.c.b16 %v1723, %v1722
      %v1732 = vpack.c.b16 %v1725, %v1724
      %v1733 = vpack.c.b16 %v1727, %v1726
      %v1741 = vsel %vm925, %v1671, 0
      %v1744 = vsel %vm925, %v1672, 0
      %v1747 = vsel %vm925, %v1673, 0
      %v1750 = vsel %vm925, %v1674, 0
      %v1753 = vsel %vm925, %v1675, 0
      %v1756 = vsel %vm925, %v1676, 0
      %v1759 = vsel %vm925, %v1677, 0
      %1761 = vmatprep.subr.bf16.mxu0 0
      %1762 = vmatpush1.bf16.msra.mxu0 0
      %1763 = vmatprep.subr.bf16.mxu0 0
      %1764 = vmatpush1.bf16.msra.mxu0 0
      %1765 = vmatprep.subr.bf16.mxu0 0
      %1766 = vmatpush1.bf16.msra.mxu0 %v1733
      %1767 = vmatprep.subr.bf16.mxu0 0
      %1768 = vmatpush1.bf16.msra.mxu0 %v1732
      %1769 = vmatprep.subr.bf16.mxu0 0
      %1770 = vmatpush1.bf16.msra.mxu0 %v1731
      %1771 = vmatprep.subr.bf16.mxu0 0
      %1772 = vmatpush1.bf16.msra.mxu0 %v1730
      %1773 = vmatprep.subr.bf16.mxu0 0
      %1774 = vmatpush1.bf16.msra.mxu0 %v1729
      %1775 = vmatprep.subr.bf16.mxu0 0
      %1776 = vmatpush1.bf16.msra.mxu0 %v1728
      %1777 = vmatprep.subr.bf16.mxu0 0
      %1778 = vmatpush2.bf16.msra.mxu0 0
      %1779 = vmatprep.subr.bf16.mxu0 0
      %1780 = vmatpush2.bf16.msra.mxu0 0
      %1781 = vmatprep.subr.bf16.mxu0 0
      %1782 = vmatpush2.bf16.msra.mxu0 0
      %1783 = vmatprep.subr.bf16.mxu0 0
      %1784 = vmatpush2.bf16.msra.mxu0 0
      %1785 = vmatprep.subr.bf16.mxu0 0
      %1786 = vmatpush2.bf16.msra.mxu0 0
      %1787 = vmatprep.subr.bf16.mxu0 0
      %1788 = vmatpush2.bf16.msra.mxu0 0
      %1789 = vmatprep.subr.bf16.mxu0 0
      %1790 = vmatpush2.bf16.msra.mxu0 0
      %1791 = vmatprep.subr.bf16.mxu0 0
      %1792 = vmatpush2.bf16.msra.mxu0 0
      %1793 = vmatprep.mubr.bf16.mxu0 0
      %1794 = vmatmul.mubr.bf16.gmra.mxu0 %v1741
      %v1795 = vpop.f32.mrf.mxu0
      %v1796 = vadd.f32 0.0, %v1795
      %v1797 = vpop.f32.mrf.mxu0
      %v1798 = vpop.f32.mrf.mxu0
      %v1799 = vadd.f32 0.0, %v1798
      %v1800 = vpop.f32.mrf.mxu0
      %1801 = vmatprep.mubr.bf16.mxu0 0
      %1802 = vmatmul.mubr.bf16.gmra.mxu0 %v1744
      %v1803 = vpop.f32.mrf.mxu0
      %v1804 = vadd.f32 0.0, %v1803
      %v1805 = vpop.f32.mrf.mxu0
      %v1806 = vpop.f32.mrf.mxu0
      %v1807 = vadd.f32 0.0, %v1806
      %v1808 = vpop.f32.mrf.mxu0
      %1809 = vmatprep.mubr.bf16.mxu0 0
      %1810 = vmatmul.mubr.bf16.gmra.mxu0 %v1747
      %v1811 = vpop.f32.mrf.mxu0
      %v1812 = vadd.f32 0.0, %v1811
      %v1813 = vpop.f32.mrf.mxu0
      %v1814 = vpop.f32.mrf.mxu0
      %v1815 = vadd.f32 0.0, %v1814
      %v1816 = vpop.f32.mrf.mxu0
      %1817 = vmatprep.mubr.bf16.mxu0 0
      %1818 = vmatmul.mubr.bf16.gmra.mxu0 %v1750
      %v1819 = vpop.f32.mrf.mxu0
      %v1820 = vadd.f32 0.0, %v1819
      %v1821 = vpop.f32.mrf.mxu0
      %v1822 = vpop.f32.mrf.mxu0
      %v1823 = vadd.f32 0.0, %v1822
      %v1824 = vpop.f32.mrf.mxu0
      %1825 = vmatprep.mubr.bf16.mxu0 0
      %1826 = vmatmul.mubr.bf16.gmra.mxu0 %v1753
      %v1827 = vpop.f32.mrf.mxu0
      %v1828 = vadd.f32 0.0, %v1827
      %v1829 = vpop.f32.mrf.mxu0
      %v1830 = vpop.f32.mrf.mxu0
      %v1831 = vadd.f32 0.0, %v1830
      %v1832 = vpop.f32.mrf.mxu0
      %1833 = vmatprep.mubr.bf16.mxu0 0
      %1834 = vmatmul.mubr.bf16.gmra.mxu0 %v1756
      %v1835 = vpop.f32.mrf.mxu0
      %v1836 = vadd.f32 0.0, %v1835
      %v1837 = vpop.f32.mrf.mxu0
      %v1838 = vpop.f32.mrf.mxu0
      %v1839 = vadd.f32 0.0, %v1838
      %v1840 = vpop.f32.mrf.mxu0
      %1841 = vmatprep.mubr.bf16.mxu0 0
      %1842 = vmatmul.mubr.bf16.gmra.mxu0 %v1759
      %v1843 = vpop.f32.mrf.mxu0
      %v1844 = vadd.f32 0.0, %v1843
      %v1845 = vpop.f32.mrf.mxu0
      %v1846 = vpop.f32.mrf.mxu0
      %v1847 = vadd.f32 0.0, %v1846
      %v1848 = vpop.f32.mrf.mxu0
      %1849 = vdwg.mxu0
      %v1862 = vunpack.c.l.b16 %v1679
      %v1863 = vunpack.c.l.b16 %v1680
      %v1864 = vunpack.c.l.b16 %v1681
      %v1865 = vunpack.c.l.b16 %v1682
      %v1866 = vunpack.c.l.b16 %v1683
      %v1867 = vunpack.c.l.b16 %v1684
      %v1868 = vunpack.c.l.b16 %v1685
      %v1869 = vunpack.c.l.b16 %v1686
      %v1870 = vunpack.c.l.b16 %v1687
      %v1871 = vunpack.c.l.b16 %v1688
      %v1872 = vunpack.c.l.b16 %v1689
      %v1873 = vunpack.c.l.b16 %v1690
      %v1874 = vpack.c.b16 %v1863, %v1862
      %v1875 = vpack.c.b16 %v1865, %v1864
      %v1876 = vpack.c.b16 %v1867, %v1866
      %v1877 = vpack.c.b16 %v1869, %v1868
      %v1878 = vpack.c.b16 %v1871, %v1870
      %v1879 = vpack.c.b16 %v1873, %v1872
      %v1887 = vsel %vm925, %v1670, 0
      %1889 = vmatprep.subr.bf16.mxu0 0
      %1890 = vmatpush1.bf16.msra.mxu0 0
      %1891 = vmatprep.subr.bf16.mxu0 0
      %1892 = vmatpush1.bf16.msra.mxu0 0
      %1893 = vmatprep.subr.bf16.mxu0 0
      %1894 = vmatpush1.bf16.msra.mxu0 %v1879
      %1895 = vmatprep.subr.bf16.mxu0 0
      %1896 = vmatpush1.bf16.msra.mxu0 %v1878
      %1897 = vmatprep.subr.bf16.mxu0 0
      %1898 = vmatpush1.bf16.msra.mxu0 %v1877
      %1899 = vmatprep.subr.bf16.mxu0 0
      %1900 = vmatpush1.bf16.msra.mxu0 %v1876
      %1901 = vmatprep.subr.bf16.mxu0 0
      %1902 = vmatpush1.bf16.msra.mxu0 %v1875
      %1903 = vmatprep.subr.bf16.mxu0 0
      %1904 = vmatpush1.bf16.msra.mxu0 %v1874
      %1905 = vmatprep.subr.bf16.mxu0 0
      %1906 = vmatpush2.bf16.msra.mxu0 0
      %1907 = vmatprep.subr.bf16.mxu0 0
      %1908 = vmatpush2.bf16.msra.mxu0 0
      %1909 = vmatprep.subr.bf16.mxu0 0
      %1910 = vmatpush2.bf16.msra.mxu0 0
      %1911 = vmatprep.subr.bf16.mxu0 0
      %1912 = vmatpush2.bf16.msra.mxu0 0
      %1913 = vmatprep.subr.bf16.mxu0 0
      %1914 = vmatpush2.bf16.msra.mxu0 0
      %1915 = vmatprep.subr.bf16.mxu0 0
      %1916 = vmatpush2.bf16.msra.mxu0 0
      %1917 = vmatprep.subr.bf16.mxu0 0
      %1918 = vmatpush2.bf16.msra.mxu0 0
      %1919 = vmatprep.subr.bf16.mxu0 0
      %1920 = vmatpush2.bf16.msra.mxu0 0
      %1921 = vmatprep.mubr.bf16.mxu0 0
      %1922 = vmatmul.mubr.bf16.gmra.mxu0 %v1887
      %v1923 = vpop.f32.mrf.mxu0
      %v1924 = vadd.f32 %v1796, %v1923
      %v1925 = vpop.f32.mrf.mxu0
      %v1926 = vpop.f32.mrf.mxu0
      %v1927 = vadd.f32 %v1799, %v1926
      %v1928 = vpop.f32.mrf.mxu0
      %1929 = vmatprep.mubr.bf16.mxu0 0
      %1930 = vmatmul.mubr.bf16.gmra.mxu0 %v1741
      %v1931 = vpop.f32.mrf.mxu0
      %v1932 = vadd.f32 %v1804, %v1931
      %v1933 = vpop.f32.mrf.mxu0
      %v1934 = vpop.f32.mrf.mxu0
      %v1935 = vadd.f32 %v1807, %v1934
      %v1936 = vpop.f32.mrf.mxu0
      %1937 = vmatprep.mubr.bf16.mxu0 0
      %1938 = vmatmul.mubr.bf16.gmra.mxu0 %v1744
      %v1939 = vpop.f32.mrf.mxu0
      %v1940 = vadd.f32 %v1812, %v1939
      %v1941 = vpop.f32.mrf.mxu0
      %v1942 = vpop.f32.mrf.mxu0
      %v1943 = vadd.f32 %v1815, %v1942
      %v1944 = vpop.f32.mrf.mxu0
      %1945 = vmatprep.mubr.bf16.mxu0 0
      %1946 = vmatmul.mubr.bf16.gmra.mxu0 %v1747
      %v1947 = vpop.f32.mrf.mxu0
      %v1948 = vadd.f32 %v1820, %v1947
      %v1949 = vpop.f32.mrf.mxu0
      %v1950 = vpop.f32.mrf.mxu0
      %v1951 = vadd.f32 %v1823, %v1950
      %v1952 = vpop.f32.mrf.mxu0
      %1953 = vmatprep.mubr.bf16.mxu0 0
      %1954 = vmatmul.mubr.bf16.gmra.mxu0 %v1750
      %v1955 = vpop.f32.mrf.mxu0
      %v1956 = vadd.f32 %v1828, %v1955
      %v1957 = vpop.f32.mrf.mxu0
      %v1958 = vpop.f32.mrf.mxu0
      %v1959 = vadd.f32 %v1831, %v1958
      %v1960 = vpop.f32.mrf.mxu0
      %1961 = vmatprep.mubr.bf16.mxu0 0
      %1962 = vmatmul.mubr.bf16.gmra.mxu0 %v1753
      %v1963 = vpop.f32.mrf.mxu0
      %v1964 = vadd.f32 %v1836, %v1963
      %v1965 = vpop.f32.mrf.mxu0
      %v1966 = vpop.f32.mrf.mxu0
      %v1967 = vadd.f32 %v1839, %v1966
      %v1968 = vpop.f32.mrf.mxu0
      %1969 = vmatprep.mubr.bf16.mxu0 0
      %1970 = vmatmul.mubr.bf16.gmra.mxu0 %v1756
      %v1971 = vpop.f32.mrf.mxu0
      %v1972 = vadd.f32 %v1844, %v1971
      %v1973 = vpop.f32.mrf.mxu0
      %v1974 = vpop.f32.mrf.mxu0
      %v1975 = vadd.f32 %v1847, %v1974
      %v1976 = vpop.f32.mrf.mxu0
      %1977 = vdwg.mxu0
      %s1978 = scalar_lea.vmem %s3, 96
      %v1979 = vld [vmem:[%s1978] sm:$0xf]
      %v1980 = vld [vmem:[%s1978 + $0x4] sm:$0xf]
      %v1981 = vld [vmem:[%s1978 + $0x8] sm:$0xf]
      %v1982 = vld [vmem:[%s1978 + $0xc] sm:$0xf]
      %v1983 = vld [vmem:[%s1978 + $0x10] sm:$0xf]
      %v1984 = vld [vmem:[%s1978 + $0x14] sm:$0xf]
      %v1985 = vld [vmem:[%s1978 + $0x18] sm:$0xf]
      %v1986 = vld [vmem:[%s1978 + $0x1c] sm:$0xf]
      %v1987 = vld [vmem:[%s1978 + $0x20] sm:$0xf]
      %v1988 = vld [vmem:[%s1978 + $0x24] sm:$0xf]
      %v1989 = vld [vmem:[%s1978 + $0x28] sm:$0xf]
      %v1990 = vld [vmem:[%s1978 + $0x2c] sm:$0xf]
      %v2003 = vunpack.c.l.b16 %v1979
      %v2004 = vunpack.c.l.b16 %v1980
      %v2005 = vunpack.c.l.b16 %v1981
      %v2006 = vunpack.c.l.b16 %v1982
      %v2007 = vunpack.c.l.b16 %v1983
      %v2008 = vunpack.c.l.b16 %v1984
      %v2009 = vunpack.c.l.b16 %v1985
      %v2010 = vunpack.c.l.b16 %v1986
      %v2011 = vunpack.c.l.b16 %v1987
      %v2012 = vunpack.c.l.b16 %v1988
      %v2013 = vunpack.c.l.b16 %v1989
      %v2014 = vunpack.c.l.b16 %v1990
      %v2015 = vpack.c.b16 %v2004, %v2003
      %v2016 = vpack.c.b16 %v2006, %v2005
      %v2017 = vpack.c.b16 %v2008, %v2007
      %v2018 = vpack.c.b16 %v2010, %v2009
      %v2019 = vpack.c.b16 %v2012, %v2011
      %v2020 = vpack.c.b16 %v2014, %v2013
      %v2028 = vsel %vm925, %v1678, 0
      %2030 = vmatprep.subr.bf16.mxu0 0
      %2031 = vmatpush1.bf16.msra.mxu0 0
      %2032 = vmatprep.subr.bf16.mxu0 0
      %2033 = vmatpush1.bf16.msra.mxu0 0
      %2034 = vmatprep.subr.bf16.mxu0 0
      %2035 = vmatpush1.bf16.msra.mxu0 %v2020
      %2036 = vmatprep.subr.bf16.mxu0 0
      %2037 = vmatpush1.bf16.msra.mxu0 %v2019
      %2038 = vmatprep.subr.bf16.mxu0 0
      %2039 = vmatpush1.bf16.msra.mxu0 %v2018
      %2040 = vmatprep.subr.bf16.mxu0 0
      %2041 = vmatpush1.bf16.msra.mxu0 %v2017
      %2042 = vmatprep.subr.bf16.mxu0 0
      %2043 = vmatpush1.bf16.msra.mxu0 %v2016
      %2044 = vmatprep.subr.bf16.mxu0 0
      %2045 = vmatpush1.bf16.msra.mxu0 %v2015
      %2046 = vmatprep.subr.bf16.mxu0 0
      %2047 = vmatpush2.bf16.msra.mxu0 0
      %2048 = vmatprep.subr.bf16.mxu0 0
      %2049 = vmatpush2.bf16.msra.mxu0 0
      %2050 = vmatprep.subr.bf16.mxu0 0
      %2051 = vmatpush2.bf16.msra.mxu0 0
      %2052 = vmatprep.subr.bf16.mxu0 0
      %2053 = vmatpush2.bf16.msra.mxu0 0
      %2054 = vmatprep.subr.bf16.mxu0 0
      %2055 = vmatpush2.bf16.msra.mxu0 0
      %2056 = vmatprep.subr.bf16.mxu0 0
      %2057 = vmatpush2.bf16.msra.mxu0 0
      %2058 = vmatprep.subr.bf16.mxu0 0
      %2059 = vmatpush2.bf16.msra.mxu0 0
      %2060 = vmatprep.subr.bf16.mxu0 0
      %2061 = vmatpush2.bf16.msra.mxu0 0
      %2062 = vmatprep.mubr.bf16.mxu0 0
      %2063 = vmatmul.mubr.bf16.gmra.mxu0 %v1744
      %v2064 = vpop.f32.mrf.mxu0
      %v2065 = vadd.f32 0.0, %v2064
      %v2066 = vpop.f32.mrf.mxu0
      %v2067 = vpop.f32.mrf.mxu0
      %v2068 = vadd.f32 0.0, %v2067
      %v2069 = vpop.f32.mrf.mxu0
      %2070 = vmatprep.mubr.bf16.mxu0 0
      %2071 = vmatmul.mubr.bf16.gmra.mxu0 %v1747
      %v2072 = vpop.f32.mrf.mxu0
      %v2073 = vadd.f32 0.0, %v2072
      %v2074 = vpop.f32.mrf.mxu0
      %v2075 = vpop.f32.mrf.mxu0
      %v2076 = vadd.f32 0.0, %v2075
      %v2077 = vpop.f32.mrf.mxu0
      %2078 = vmatprep.mubr.bf16.mxu0 0
      %2079 = vmatmul.mubr.bf16.gmra.mxu0 %v1750
      %v2080 = vpop.f32.mrf.mxu0
      %v2081 = vadd.f32 0.0, %v2080
      %v2082 = vpop.f32.mrf.mxu0
      %v2083 = vpop.f32.mrf.mxu0
      %v2084 = vadd.f32 0.0, %v2083
      %v2085 = vpop.f32.mrf.mxu0
      %2086 = vmatprep.mubr.bf16.mxu0 0
      %2087 = vmatmul.mubr.bf16.gmra.mxu0 %v1753
      %v2088 = vpop.f32.mrf.mxu0
      %v2089 = vadd.f32 0.0, %v2088
      %v2090 = vpop.f32.mrf.mxu0
      %v2091 = vpop.f32.mrf.mxu0
      %v2092 = vadd.f32 0.0, %v2091
      %v2093 = vpop.f32.mrf.mxu0
      %2094 = vmatprep.mubr.bf16.mxu0 0
      %2095 = vmatmul.mubr.bf16.gmra.mxu0 %v1756
      %v2096 = vpop.f32.mrf.mxu0
      %v2097 = vadd.f32 0.0, %v2096
      %v2098 = vpop.f32.mrf.mxu0
      %v2099 = vpop.f32.mrf.mxu0
      %v2100 = vadd.f32 0.0, %v2099
      %v2101 = vpop.f32.mrf.mxu0
      %2102 = vmatprep.mubr.bf16.mxu0 0
      %2103 = vmatmul.mubr.bf16.gmra.mxu0 %v1759
      %v2104 = vpop.f32.mrf.mxu0
      %v2105 = vadd.f32 0.0, %v2104
      %v2106 = vpop.f32.mrf.mxu0
      %v2107 = vpop.f32.mrf.mxu0
      %v2108 = vadd.f32 0.0, %v2107
      %v2109 = vpop.f32.mrf.mxu0
      %2110 = vmatprep.mubr.bf16.mxu0 0
      %2111 = vmatmul.mubr.bf16.gmra.mxu0 %v2028
      %v2112 = vpop.f32.mrf.mxu0
      %v2113 = vadd.f32 0.0, %v2112
      %v2114 = vpop.f32.mrf.mxu0
      %v2115 = vpop.f32.mrf.mxu0
      %v2116 = vadd.f32 0.0, %v2115
      %v2117 = vpop.f32.mrf.mxu0
      %2118 = vdwg.mxu0
      %v2119 = vadd.f32 %v1924, %v2065
      %v2120 = vadd.f32 %v1927, %v2068
      %v2121 = vadd.f32 %v1932, %v2073
      %v2122 = vadd.f32 %v1935, %v2076
      %v2123 = vadd.f32 %v1940, %v2081
      %v2124 = vadd.f32 %v1943, %v2084
      %v2125 = vadd.f32 %v1948, %v2089
      %v2126 = vadd.f32 %v1951, %v2092
      %v2127 = vadd.f32 %v1956, %v2097
      %v2128 = vadd.f32 %v1959, %v2100
      %v2129 = vadd.f32 %v1964, %v2105
      %v2130 = vadd.f32 %v1967, %v2108
      %v2131 = vadd.f32 %v1972, %v2113
      %v2132 = vadd.f32 %v1975, %v2116
      %v2133 = vld [vmem:[%s5 + $0x2] sm:$0x1]
      %v2134 = vlaneseq
      %v2135 = vshrl.u32 %v2134, 7
      %v2136 = vsub.s32 0, %v2135
      %v2137 = vrot.slane %v2133, %v2136
      %v2138 = vadd.f32 %v2119, %v2137
      %v2139 = vadd.f32 %v2120, %v2137
      %v2140 = vadd.f32 %v2121, %v2137
      %v2141 = vadd.f32 %v2122, %v2137
      %v2142 = vadd.f32 %v2123, %v2137
      %v2143 = vadd.f32 %v2124, %v2137
      %v2144 = vadd.f32 %v2125, %v2137
      %v2145 = vadd.f32 %v2126, %v2137
      %v2146 = vadd.f32 %v2127, %v2137
      %v2147 = vadd.f32 %v2128, %v2137
      %v2148 = vadd.f32 %v2129, %v2137
      %v2149 = vadd.f32 %v2130, %v2137
      %v2150 = vadd.f32 %v2131, %v2137
      %v2151 = vadd.f32 %v2132, %v2137
      %v2152 = vmax.f32 %v2138, 0.0
      %v2153 = vmax.f32 %v2139, 0.0
      %v2154 = vmax.f32 %v2140, 0.0
      %v2155 = vmax.f32 %v2141, 0.0
      %v2156 = vmax.f32 %v2142, 0.0
      %v2157 = vmax.f32 %v2143, 0.0
      %v2158 = vmax.f32 %v2144, 0.0
      %v2159 = vmax.f32 %v2145, 0.0
      %v2160 = vmax.f32 %v2146, 0.0
      %v2161 = vmax.f32 %v2147, 0.0
      %v2162 = vmax.f32 %v2148, 0.0
      %v2163 = vmax.f32 %v2149, 0.0
      %v2164 = vmax.f32 %v2150, 0.0
      %v2165 = vmax.f32 %v2151, 0.0
      %v2166 = vrot.slane %v2152, 1
      %v2167 = vrot.slane %v2153, 1
      %v2168 = vrot.slane %v2154, 1
      %v2169 = vrot.slane %v2155, 1
      %v2170 = vrot.slane %v2156, 1
      %v2171 = vrot.slane %v2157, 1
      %v2172 = vrot.slane %v2158, 1
      %v2173 = vrot.slane %v2159, 1
      %v2174 = vrot.slane %v2160, 1
      %v2175 = vrot.slane %v2161, 1
      %v2176 = vrot.slane %v2162, 1
      %v2177 = vrot.slane %v2163, 1
      %v2178 = vrot.slane %v2164, 1
      %v2179 = vrot.slane %v2165, 1
      %v2180 = vsel %vm563, %v2178, %v2179
      %v2181 = vsel %vm563, %v2177, %v2178
      %v2182 = vsel %vm563, %v2176, %v2177
      %v2183 = vsel %vm563, %v2175, %v2176
      %v2184 = vsel %vm563, %v2174, %v2175
      %v2185 = vsel %vm563, %v2173, %v2174
      %v2186 = vsel %vm563, %v2172, %v2173
      %v2187 = vsel %vm563, %v2171, %v2172
      %v2188 = vsel %vm563, %v2170, %v2171
      %v2189 = vsel %vm563, %v2169, %v2170
      %v2190 = vsel %vm563, %v2168, %v2169
      %v2191 = vsel %vm563, %v2167, %v2168
      %v2192 = vsel %vm563, %v2166, %v2167
      %v2193 = vsel %vm563, %v2179, %v2166
      %v2194 = vrot.slane %v2152, 2
      %v2195 = vrot.slane %v2153, 2
      %v2196 = vrot.slane %v2154, 2
      %v2197 = vrot.slane %v2155, 2
      %v2198 = vrot.slane %v2156, 2
      %v2199 = vrot.slane %v2157, 2
      %v2200 = vrot.slane %v2158, 2
      %v2201 = vrot.slane %v2159, 2
      %v2202 = vrot.slane %v2160, 2
      %v2203 = vrot.slane %v2161, 2
      %v2204 = vrot.slane %v2162, 2
      %v2205 = vrot.slane %v2163, 2
      %v2206 = vrot.slane %v2164, 2
      %v2207 = vrot.slane %v2165, 2
      %v2208 = vsel %vm608, %v2206, %v2207
      %v2209 = vsel %vm608, %v2205, %v2206
      %v2210 = vsel %vm608, %v2204, %v2205
      %v2211 = vsel %vm608, %v2203, %v2204
      %v2212 = vsel %vm608, %v2202, %v2203
      %v2213 = vsel %vm608, %v2201, %v2202
      %v2214 = vsel %vm608, %v2200, %v2201
      %v2215 = vsel %vm608, %v2199, %v2200
      %v2216 = vsel %vm608, %v2198, %v2199
      %v2217 = vsel %vm608, %v2197, %v2198
      %v2218 = vsel %vm608, %v2196, %v2197
      %v2219 = vsel %vm608, %v2195, %v2196
      %v2220 = vsel %vm608, %v2194, %v2195
      %v2221 = vsel %vm608, %v2207, %v2194
      %2236 = vrot.lane.b32.xlu0 %v2192, 32
      %v2237 = vpop.permute.xlu0 %2236
      %2238 = vrot.lane.b32.xlu0 %v2191, 32
      %v2239 = vpop.permute.xlu0 %2238
      %2240 = vrot.lane.b32.xlu0 %v2190, 32
      %v2241 = vpop.permute.xlu0 %2240
      %2242 = vrot.lane.b32.xlu0 %v2189, 32
      %v2243 = vpop.permute.xlu0 %2242
      %2244 = vrot.lane.b32.xlu0 %v2188, 32
      %v2245 = vpop.permute.xlu0 %2244
      %2246 = vrot.lane.b32.xlu0 %v2187, 32
      %v2247 = vpop.permute.xlu0 %2246
      %2248 = vrot.lane.b32.xlu0 %v2186, 32
      %v2249 = vpop.permute.xlu0 %2248
      %2250 = vrot.lane.b32.xlu0 %v2185, 32
      %v2251 = vpop.permute.xlu0 %2250
      %2252 = vrot.lane.b32.xlu0 %v2184, 32
      %v2253 = vpop.permute.xlu0 %2252
      %2254 = vrot.lane.b32.xlu0 %v2183, 32
      %v2255 = vpop.permute.xlu0 %2254
      %2256 = vrot.lane.b32.xlu0 %v2182, 32
      %v2257 = vpop.permute.xlu0 %2256
      %2258 = vrot.lane.b32.xlu0 %v2181, 32
      %v2259 = vpop.permute.xlu0 %2258
      %2260 = vrot.lane.b32.xlu0 %v2180, 32
      %v2261 = vpop.permute.xlu0 %2260
      %2262 = vrot.lane.b32.xlu0 %v2193, 32
      %v2263 = vpop.permute.xlu0 %2262
      %2292 = vrot.lane.b32.xlu0 %v2220, 64
      %v2293 = vpop.permute.xlu0 %2292
      %2294 = vrot.lane.b32.xlu0 %v2219, 64
      %v2295 = vpop.permute.xlu0 %2294
      %2296 = vrot.lane.b32.xlu0 %v2218, 64
      %v2297 = vpop.permute.xlu0 %2296
      %2298 = vrot.lane.b32.xlu0 %v2217, 64
      %v2299 = vpop.permute.xlu0 %2298
      %2300 = vrot.lane.b32.xlu0 %v2216, 64
      %v2301 = vpop.permute.xlu0 %2300
      %2302 = vrot.lane.b32.xlu0 %v2215, 64
      %v2303 = vpop.permute.xlu0 %2302
      %2304 = vrot.lane.b32.xlu0 %v2214, 64
      %v2305 = vpop.permute.xlu0 %2304
      %2306 = vrot.lane.b32.xlu0 %v2213, 64
      %v2307 = vpop.permute.xlu0 %2306
      %2308 = vrot.lane.b32.xlu0 %v2212, 64
      %v2309 = vpop.permute.xlu0 %2308
      %2310 = vrot.lane.b32.xlu0 %v2211, 64
      %v2311 = vpop.permute.xlu0 %2310
      %2312 = vrot.lane.b32.xlu0 %v2210, 64
      %v2313 = vpop.permute.xlu0 %2312
      %2314 = vrot.lane.b32.xlu0 %v2209, 64
      %v2315 = vpop.permute.xlu0 %2314
      %2316 = vrot.lane.b32.xlu0 %v2208, 64
      %v2317 = vpop.permute.xlu0 %2316
      %2318 = vrot.lane.b32.xlu0 %v2221, 64
      %v2319 = vpop.permute.xlu0 %2318
      %v2334 = vsel %vm807, %v2152, %v2237
      %v2335 = vsel %vm807, %v2153, %v2239
      %v2336 = vsel %vm807, %v2154, %v2241
      %v2337 = vsel %vm807, %v2155, %v2243
      %v2338 = vsel %vm807, %v2156, %v2245
      %v2339 = vsel %vm807, %v2157, %v2247
      %v2340 = vsel %vm807, %v2158, %v2249
      %v2341 = vsel %vm807, %v2159, %v2251
      %v2342 = vsel %vm807, %v2160, %v2253
      %v2343 = vsel %vm807, %v2161, %v2255
      %v2344 = vsel %vm807, %v2162, %v2257
      %v2345 = vsel %vm807, %v2163, %v2259
      %v2346 = vsel %vm807, %v2164, %v2261
      %v2347 = vsel %vm807, %v2165, %v2263
      %v2348 = vsel %vm830, %v2334, %v2293
      %v2349 = vsel %vm830, %v2335, %v2295
      %v2350 = vsel %vm830, %v2336, %v2297
      %v2351 = vsel %vm830, %v2337, %v2299
      %v2352 = vsel %vm830, %v2338, %v2301
      %v2353 = vsel %vm830, %v2339, %v2303
      %v2354 = vsel %vm830, %v2340, %v2305
      %v2355 = vsel %vm830, %v2341, %v2307
      %v2356 = vsel %vm830, %v2342, %v2309
      %v2357 = vsel %vm830, %v2343, %v2311
      %v2358 = vsel %vm830, %v2344, %v2313
      %v2359 = vsel %vm830, %v2345, %v2315
      %v2360 = vsel %vm830, %v2346, %v2317
      %v2361 = vsel %vm830, %v2347, %v2319
      %v2362 = vpack.c.bf16 %v2349, %v2348
      %v2363 = vpack.c.bf16 %v2351, %v2350
      %v2364 = vpack.c.bf16 %v2353, %v2352
      %v2365 = vpack.c.bf16 %v2355, %v2354
      %v2366 = vpack.c.bf16 %v2357, %v2356
      %v2367 = vpack.c.bf16 %v2359, %v2358
      %v2368 = vpack.c.bf16 %v2361, %v2360
      %v2369 = vld [vmem:[%s4] sm:$0xf]
      %v2370 = vld [vmem:[%s4 + $0x4] sm:$0xf]
      %v2371 = vld [vmem:[%s4 + $0x8] sm:$0xf]
      %v2372 = vld [vmem:[%s4 + $0xc] sm:$0xf]
      %v2373 = vld [vmem:[%s4 + $0x10] sm:$0xf]
      %v2374 = vld [vmem:[%s4 + $0x14] sm:$0xf]
      %v2375 = vld [vmem:[%s4 + $0x18] sm:$0xf]
      %v2376 = vld [vmem:[%s4 + $0x1c] sm:$0xf]
      %v2377 = vld [vmem:[%s4 + $0x20] sm:$0xf]
      %v2378 = vld [vmem:[%s4 + $0x24] sm:$0xf]
      %v2379 = vld [vmem:[%s4 + $0x28] sm:$0xf]
      %v2380 = vld [vmem:[%s4 + $0x2c] sm:$0xf]
      %s2381 = scalar_lea.vmem %s4, 48
      %v2382 = vld [vmem:[%s2381] sm:$0xf]
      %v2383 = vld [vmem:[%s2381 + $0x4] sm:$0xf]
      %v2384 = vld [vmem:[%s2381 + $0x8] sm:$0xf]
      %v2385 = vld [vmem:[%s2381 + $0xc] sm:$0xf]
      %v2386 = vld [vmem:[%s2381 + $0x10] sm:$0xf]
      %v2387 = vld [vmem:[%s2381 + $0x14] sm:$0xf]
      %v2388 = vld [vmem:[%s2381 + $0x18] sm:$0xf]
      %v2389 = vld [vmem:[%s2381 + $0x1c] sm:$0xf]
      %v2390 = vld [vmem:[%s2381 + $0x20] sm:$0xf]
      %v2391 = vld [vmem:[%s2381 + $0x24] sm:$0xf]
      %v2392 = vld [vmem:[%s2381 + $0x28] sm:$0xf]
      %v2393 = vld [vmem:[%s2381 + $0x2c] sm:$0xf]
      %v2406 = vunpack.c.l.b16 %v2382
      %v2407 = vunpack.c.l.b16 %v2383
      %v2408 = vunpack.c.l.b16 %v2384
      %v2409 = vunpack.c.l.b16 %v2385
      %v2410 = vunpack.c.l.b16 %v2386
      %v2411 = vunpack.c.l.b16 %v2387
      %v2412 = vunpack.c.l.b16 %v2388
      %v2413 = vunpack.c.l.b16 %v2389
      %v2414 = vunpack.c.l.b16 %v2390
      %v2415 = vunpack.c.l.b16 %v2391
      %v2416 = vunpack.c.l.b16 %v2392
      %v2417 = vunpack.c.l.b16 %v2393
      %v2418 = vpack.c.b16 %v2407, %v2406
      %v2419 = vpack.c.b16 %v2409, %v2408
      %v2420 = vpack.c.b16 %v2411, %v2410
      %v2421 = vpack.c.b16 %v2413, %v2412
      %v2422 = vpack.c.b16 %v2415, %v2414
      %v2423 = vpack.c.b16 %v2417, %v2416
      %v2431 = vsel %vm925, %v2363, 0
      %v2434 = vsel %vm925, %v2364, 0
      %v2437 = vsel %vm925, %v2365, 0
      %v2440 = vsel %vm925, %v2366, 0
      %v2443 = vsel %vm925, %v2367, 0
      %2445 = vmatprep.subr.bf16.mxu0 0
      %2446 = vmatpush1.bf16.msra.mxu0 0
      %2447 = vmatprep.subr.bf16.mxu0 0
      %2448 = vmatpush1.bf16.msra.mxu0 0
      %2449 = vmatprep.subr.bf16.mxu0 0
      %2450 = vmatpush1.bf16.msra.mxu0 %v2423
      %2451 = vmatprep.subr.bf16.mxu0 0
      %2452 = vmatpush1.bf16.msra.mxu0 %v2422
      %2453 = vmatprep.subr.bf16.mxu0 0
      %2454 = vmatpush1.bf16.msra.mxu0 %v2421
      %2455 = vmatprep.subr.bf16.mxu0 0
      %2456 = vmatpush1.bf16.msra.mxu0 %v2420
      %2457 = vmatprep.subr.bf16.mxu0 0
      %2458 = vmatpush1.bf16.msra.mxu0 %v2419
      %2459 = vmatprep.subr.bf16.mxu0 0
      %2460 = vmatpush1.bf16.msra.mxu0 %v2418
      %2461 = vmatprep.subr.bf16.mxu0 0
      %2462 = vmatpush2.bf16.msra.mxu0 0
      %2463 = vmatprep.subr.bf16.mxu0 0
      %2464 = vmatpush2.bf16.msra.mxu0 0
      %2465 = vmatprep.subr.bf16.mxu0 0
      %2466 = vmatpush2.bf16.msra.mxu0 0
      %2467 = vmatprep.subr.bf16.mxu0 0
      %2468 = vmatpush2.bf16.msra.mxu0 0
      %2469 = vmatprep.subr.bf16.mxu0 0
      %2470 = vmatpush2.bf16.msra.mxu0 0
      %2471 = vmatprep.subr.bf16.mxu0 0
      %2472 = vmatpush2.bf16.msra.mxu0 0
      %2473 = vmatprep.subr.bf16.mxu0 0
      %2474 = vmatpush2.bf16.msra.mxu0 0
      %2475 = vmatprep.subr.bf16.mxu0 0
      %2476 = vmatpush2.bf16.msra.mxu0 0
      %2477 = vmatprep.mubr.bf16.mxu0 0
      %2478 = vmatmul.mubr.bf16.gmra.mxu0 %v2431
      %v2479 = vpop.f32.mrf.mxu0
      %v2480 = vadd.f32 0.0, %v2479
      %v2481 = vpop.f32.mrf.mxu0
      %v2482 = vpop.f32.mrf.mxu0
      %v2483 = vadd.f32 0.0, %v2482
      %v2484 = vpop.f32.mrf.mxu0
      %2485 = vmatprep.mubr.bf16.mxu0 0
      %2486 = vmatmul.mubr.bf16.gmra.mxu0 %v2434
      %v2487 = vpop.f32.mrf.mxu0
      %v2488 = vadd.f32 0.0, %v2487
      %v2489 = vpop.f32.mrf.mxu0
      %v2490 = vpop.f32.mrf.mxu0
      %v2491 = vadd.f32 0.0, %v2490
      %v2492 = vpop.f32.mrf.mxu0
      %2493 = vmatprep.mubr.bf16.mxu0 0
      %2494 = vmatmul.mubr.bf16.gmra.mxu0 %v2437
      %v2495 = vpop.f32.mrf.mxu0
      %v2496 = vadd.f32 0.0, %v2495
      %v2497 = vpop.f32.mrf.mxu0
      %v2498 = vpop.f32.mrf.mxu0
      %v2499 = vadd.f32 0.0, %v2498
      %v2500 = vpop.f32.mrf.mxu0
      %2501 = vmatprep.mubr.bf16.mxu0 0
      %2502 = vmatmul.mubr.bf16.gmra.mxu0 %v2440
      %v2503 = vpop.f32.mrf.mxu0
      %v2504 = vadd.f32 0.0, %v2503
      %v2505 = vpop.f32.mrf.mxu0
      %v2506 = vpop.f32.mrf.mxu0
      %v2507 = vadd.f32 0.0, %v2506
      %v2508 = vpop.f32.mrf.mxu0
      %2509 = vmatprep.mubr.bf16.mxu0 0
      %2510 = vmatmul.mubr.bf16.gmra.mxu0 %v2443
      %v2511 = vpop.f32.mrf.mxu0
      %v2512 = vadd.f32 0.0, %v2511
      %v2513 = vpop.f32.mrf.mxu0
      %v2514 = vpop.f32.mrf.mxu0
      %v2515 = vadd.f32 0.0, %v2514
      %v2516 = vpop.f32.mrf.mxu0
      %2517 = vdwg.mxu0
      %v2530 = vunpack.c.l.b16 %v2369
      %v2531 = vunpack.c.l.b16 %v2370
      %v2532 = vunpack.c.l.b16 %v2371
      %v2533 = vunpack.c.l.b16 %v2372
      %v2534 = vunpack.c.l.b16 %v2373
      %v2535 = vunpack.c.l.b16 %v2374
      %v2536 = vunpack.c.l.b16 %v2375
      %v2537 = vunpack.c.l.b16 %v2376
      %v2538 = vunpack.c.l.b16 %v2377
      %v2539 = vunpack.c.l.b16 %v2378
      %v2540 = vunpack.c.l.b16 %v2379
      %v2541 = vunpack.c.l.b16 %v2380
      %v2542 = vpack.c.b16 %v2531, %v2530
      %v2543 = vpack.c.b16 %v2533, %v2532
      %v2544 = vpack.c.b16 %v2535, %v2534
      %v2545 = vpack.c.b16 %v2537, %v2536
      %v2546 = vpack.c.b16 %v2539, %v2538
      %v2547 = vpack.c.b16 %v2541, %v2540
      %v2555 = vsel %vm925, %v2362, 0
      %2557 = vmatprep.subr.bf16.mxu0 0
      %2558 = vmatpush1.bf16.msra.mxu0 0
      %2559 = vmatprep.subr.bf16.mxu0 0
      %2560 = vmatpush1.bf16.msra.mxu0 0
      %2561 = vmatprep.subr.bf16.mxu0 0
      %2562 = vmatpush1.bf16.msra.mxu0 %v2547
      %2563 = vmatprep.subr.bf16.mxu0 0
      %2564 = vmatpush1.bf16.msra.mxu0 %v2546
      %2565 = vmatprep.subr.bf16.mxu0 0
      %2566 = vmatpush1.bf16.msra.mxu0 %v2545
      %2567 = vmatprep.subr.bf16.mxu0 0
      %2568 = vmatpush1.bf16.msra.mxu0 %v2544
      %2569 = vmatprep.subr.bf16.mxu0 0
      %2570 = vmatpush1.bf16.msra.mxu0 %v2543
      %2571 = vmatprep.subr.bf16.mxu0 0
      %2572 = vmatpush1.bf16.msra.mxu0 %v2542
      %2573 = vmatprep.subr.bf16.mxu0 0
      %2574 = vmatpush2.bf16.msra.mxu0 0
      %2575 = vmatprep.subr.bf16.mxu0 0
      %2576 = vmatpush2.bf16.msra.mxu0 0
      %2577 = vmatprep.subr.bf16.mxu0 0
      %2578 = vmatpush2.bf16.msra.mxu0 0
      %2579 = vmatprep.subr.bf16.mxu0 0
      %2580 = vmatpush2.bf16.msra.mxu0 0
      %2581 = vmatprep.subr.bf16.mxu0 0
      %2582 = vmatpush2.bf16.msra.mxu0 0
      %2583 = vmatprep.subr.bf16.mxu0 0
      %2584 = vmatpush2.bf16.msra.mxu0 0
      %2585 = vmatprep.subr.bf16.mxu0 0
      %2586 = vmatpush2.bf16.msra.mxu0 0
      %2587 = vmatprep.subr.bf16.mxu0 0
      %2588 = vmatpush2.bf16.msra.mxu0 0
      %2589 = vmatprep.mubr.bf16.mxu0 0
      %2590 = vmatmul.mubr.bf16.gmra.mxu0 %v2555
      %v2591 = vpop.f32.mrf.mxu0
      %v2592 = vadd.f32 %v2480, %v2591
      %v2593 = vpop.f32.mrf.mxu0
      %v2594 = vpop.f32.mrf.mxu0
      %v2595 = vadd.f32 %v2483, %v2594
      %v2596 = vpop.f32.mrf.mxu0
      %2597 = vmatprep.mubr.bf16.mxu0 0
      %2598 = vmatmul.mubr.bf16.gmra.mxu0 %v2431
      %v2599 = vpop.f32.mrf.mxu0
      %v2600 = vadd.f32 %v2488, %v2599
      %v2601 = vpop.f32.mrf.mxu0
      %v2602 = vpop.f32.mrf.mxu0
      %v2603 = vadd.f32 %v2491, %v2602
      %v2604 = vpop.f32.mrf.mxu0
      %2605 = vmatprep.mubr.bf16.mxu0 0
      %2606 = vmatmul.mubr.bf16.gmra.mxu0 %v2434
      %v2607 = vpop.f32.mrf.mxu0
      %v2608 = vadd.f32 %v2496, %v2607
      %v2609 = vpop.f32.mrf.mxu0
      %v2610 = vpop.f32.mrf.mxu0
      %v2611 = vadd.f32 %v2499, %v2610
      %v2612 = vpop.f32.mrf.mxu0
      %2613 = vmatprep.mubr.bf16.mxu0 0
      %2614 = vmatmul.mubr.bf16.gmra.mxu0 %v2437
      %v2615 = vpop.f32.mrf.mxu0
      %v2616 = vadd.f32 %v2504, %v2615
      %v2617 = vpop.f32.mrf.mxu0
      %v2618 = vpop.f32.mrf.mxu0
      %v2619 = vadd.f32 %v2507, %v2618
      %v2620 = vpop.f32.mrf.mxu0
      %2621 = vmatprep.mubr.bf16.mxu0 0
      %2622 = vmatmul.mubr.bf16.gmra.mxu0 %v2440
      %v2623 = vpop.f32.mrf.mxu0
      %v2624 = vadd.f32 %v2512, %v2623
      %v2625 = vpop.f32.mrf.mxu0
      %v2626 = vpop.f32.mrf.mxu0
      %v2627 = vadd.f32 %v2515, %v2626
      %v2628 = vpop.f32.mrf.mxu0
      %2629 = vdwg.mxu0
      %s2630 = scalar_lea.vmem %s4, 96
      %v2631 = vld [vmem:[%s2630] sm:$0xf]
      %v2632 = vld [vmem:[%s2630 + $0x4] sm:$0xf]
      %v2633 = vld [vmem:[%s2630 + $0x8] sm:$0xf]
      %v2634 = vld [vmem:[%s2630 + $0xc] sm:$0xf]
      %v2635 = vld [vmem:[%s2630 + $0x10] sm:$0xf]
      %v2636 = vld [vmem:[%s2630 + $0x14] sm:$0xf]
      %v2637 = vld [vmem:[%s2630 + $0x18] sm:$0xf]
      %v2638 = vld [vmem:[%s2630 + $0x1c] sm:$0xf]
      %v2639 = vld [vmem:[%s2630 + $0x20] sm:$0xf]
      %v2640 = vld [vmem:[%s2630 + $0x24] sm:$0xf]
      %v2641 = vld [vmem:[%s2630 + $0x28] sm:$0xf]
      %v2642 = vld [vmem:[%s2630 + $0x2c] sm:$0xf]
      %v2655 = vunpack.c.l.b16 %v2631
      %v2656 = vunpack.c.l.b16 %v2632
      %v2657 = vunpack.c.l.b16 %v2633
      %v2658 = vunpack.c.l.b16 %v2634
      %v2659 = vunpack.c.l.b16 %v2635
      %v2660 = vunpack.c.l.b16 %v2636
      %v2661 = vunpack.c.l.b16 %v2637
      %v2662 = vunpack.c.l.b16 %v2638
      %v2663 = vunpack.c.l.b16 %v2639
      %v2664 = vunpack.c.l.b16 %v2640
      %v2665 = vunpack.c.l.b16 %v2641
      %v2666 = vunpack.c.l.b16 %v2642
      %v2667 = vpack.c.b16 %v2656, %v2655
      %v2668 = vpack.c.b16 %v2658, %v2657
      %v2669 = vpack.c.b16 %v2660, %v2659
      %v2670 = vpack.c.b16 %v2662, %v2661
      %v2671 = vpack.c.b16 %v2664, %v2663
      %v2672 = vpack.c.b16 %v2666, %v2665
      %v2680 = vsel %vm925, %v2368, 0
      %2682 = vmatprep.subr.bf16.mxu0 0
      %2683 = vmatpush1.bf16.msra.mxu0 0
      %2684 = vmatprep.subr.bf16.mxu0 0
      %2685 = vmatpush1.bf16.msra.mxu0 0
      %2686 = vmatprep.subr.bf16.mxu0 0
      %2687 = vmatpush1.bf16.msra.mxu0 %v2672
      %2688 = vmatprep.subr.bf16.mxu0 0
      %2689 = vmatpush1.bf16.msra.mxu0 %v2671
      %2690 = vmatprep.subr.bf16.mxu0 0
      %2691 = vmatpush1.bf16.msra.mxu0 %v2670
      %2692 = vmatprep.subr.bf16.mxu0 0
      %2693 = vmatpush1.bf16.msra.mxu0 %v2669
      %2694 = vmatprep.subr.bf16.mxu0 0
      %2695 = vmatpush1.bf16.msra.mxu0 %v2668
      %2696 = vmatprep.subr.bf16.mxu0 0
      %2697 = vmatpush1.bf16.msra.mxu0 %v2667
      %2698 = vmatprep.subr.bf16.mxu0 0
      %2699 = vmatpush2.bf16.msra.mxu0 0
      %2700 = vmatprep.subr.bf16.mxu0 0
      %2701 = vmatpush2.bf16.msra.mxu0 0
      %2702 = vmatprep.subr.bf16.mxu0 0
      %2703 = vmatpush2.bf16.msra.mxu0 0
      %2704 = vmatprep.subr.bf16.mxu0 0
      %2705 = vmatpush2.bf16.msra.mxu0 0
      %2706 = vmatprep.subr.bf16.mxu0 0
      %2707 = vmatpush2.bf16.msra.mxu0 0
      %2708 = vmatprep.subr.bf16.mxu0 0
      %2709 = vmatpush2.bf16.msra.mxu0 0
      %2710 = vmatprep.subr.bf16.mxu0 0
      %2711 = vmatpush2.bf16.msra.mxu0 0
      %2712 = vmatprep.subr.bf16.mxu0 0
      %2713 = vmatpush2.bf16.msra.mxu0 0
      %2714 = vmatprep.mubr.bf16.mxu0 0
      %2715 = vmatmul.mubr.bf16.gmra.mxu0 %v2434
      %v2716 = vpop.f32.mrf.mxu0
      %v2717 = vadd.f32 0.0, %v2716
      %v2718 = vpop.f32.mrf.mxu0
      %v2719 = vpop.f32.mrf.mxu0
      %v2720 = vadd.f32 0.0, %v2719
      %v2721 = vpop.f32.mrf.mxu0
      %2722 = vmatprep.mubr.bf16.mxu0 0
      %2723 = vmatmul.mubr.bf16.gmra.mxu0 %v2437
      %v2724 = vpop.f32.mrf.mxu0
      %v2725 = vadd.f32 0.0, %v2724
      %v2726 = vpop.f32.mrf.mxu0
      %v2727 = vpop.f32.mrf.mxu0
      %v2728 = vadd.f32 0.0, %v2727
      %v2729 = vpop.f32.mrf.mxu0
      %2730 = vmatprep.mubr.bf16.mxu0 0
      %2731 = vmatmul.mubr.bf16.gmra.mxu0 %v2440
      %v2732 = vpop.f32.mrf.mxu0
      %v2733 = vadd.f32 0.0, %v2732
      %v2734 = vpop.f32.mrf.mxu0
      %v2735 = vpop.f32.mrf.mxu0
      %v2736 = vadd.f32 0.0, %v2735
      %v2737 = vpop.f32.mrf.mxu0
      %2738 = vmatprep.mubr.bf16.mxu0 0
      %2739 = vmatmul.mubr.bf16.gmra.mxu0 %v2443
      %v2740 = vpop.f32.mrf.mxu0
      %v2741 = vadd.f32 0.0, %v2740
      %v2742 = vpop.f32.mrf.mxu0
      %v2743 = vpop.f32.mrf.mxu0
      %v2744 = vadd.f32 0.0, %v2743
      %v2745 = vpop.f32.mrf.mxu0
      %2746 = vmatprep.mubr.bf16.mxu0 0
      %2747 = vmatmul.mubr.bf16.gmra.mxu0 %v2680
      %v2748 = vpop.f32.mrf.mxu0
      %v2749 = vadd.f32 0.0, %v2748
      %v2750 = vpop.f32.mrf.mxu0
      %v2751 = vpop.f32.mrf.mxu0
      %v2752 = vadd.f32 0.0, %v2751
      %v2753 = vpop.f32.mrf.mxu0
      %2754 = vdwg.mxu0
      %v2755 = vadd.f32 %v2592, %v2717
      %v2756 = vadd.f32 %v2595, %v2720
      %v2757 = vadd.f32 %v2600, %v2725
      %v2758 = vadd.f32 %v2603, %v2728
      %v2759 = vadd.f32 %v2608, %v2733
      %v2760 = vadd.f32 %v2611, %v2736
      %v2761 = vadd.f32 %v2616, %v2741
      %v2762 = vadd.f32 %v2619, %v2744
      %v2763 = vadd.f32 %v2624, %v2749
      %v2764 = vadd.f32 %v2627, %v2752
      %v2765 = vld [vmem:[%s5 + $0x3] sm:$0x1]
      %v2766 = vlaneseq
      %v2767 = vshrl.u32 %v2766, 7
      %v2768 = vsub.s32 0, %v2767
      %v2769 = vrot.slane %v2765, %v2768
      %v2770 = vadd.f32 %v2755, %v2769
      %v2771 = vadd.f32 %v2756, %v2769
      %v2772 = vadd.f32 %v2757, %v2769
      %v2773 = vadd.f32 %v2758, %v2769
      %v2774 = vadd.f32 %v2759, %v2769
      %v2775 = vadd.f32 %v2760, %v2769
      %v2776 = vadd.f32 %v2761, %v2769
      %v2777 = vadd.f32 %v2762, %v2769
      %v2778 = vadd.f32 %v2763, %v2769
      %v2779 = vadd.f32 %v2764, %v2769
      %v2780 = vmax.f32 %v2770, 0.0
      %v2781 = vmax.f32 %v2771, 0.0
      %v2782 = vmax.f32 %v2772, 0.0
      %v2783 = vmax.f32 %v2773, 0.0
      %v2784 = vmax.f32 %v2774, 0.0
      %v2785 = vmax.f32 %v2775, 0.0
      %v2786 = vmax.f32 %v2776, 0.0
      %v2787 = vmax.f32 %v2777, 0.0
      %v2788 = vmax.f32 %v2778, 0.0
      %v2789 = vmax.f32 %v2779, 0.0
      %2790 = vst.msk [vmem:[%s253] sm:$0xff] %vm807, %v2780
      %2791 = vst.msk [vmem:[%s253 + $0x8] sm:$0xff] %vm807, %v2781
      %2792 = vst.msk [vmem:[%s253 + $0x10] sm:$0xff] %vm807, %v2782
      %2793 = vst.msk [vmem:[%s253 + $0x18] sm:$0xff] %vm807, %v2783
      %2794 = vst.msk [vmem:[%s253 + $0x20] sm:$0xff] %vm807, %v2784
      %2795 = vst.msk [vmem:[%s253 + $0x28] sm:$0xff] %vm807, %v2785
      %2796 = vst.msk [vmem:[%s253 + $0x30] sm:$0xff] %vm807, %v2786
      %2797 = vst.msk [vmem:[%s253 + $0x38] sm:$0xff] %vm807, %v2787
      %2798 = vst.msk [vmem:[%s253 + $0x40] sm:$0xff] %vm807, %v2788
      %2799 = vst.msk [vmem:[%s253 + $0x48] sm:$0xff] %vm807, %v2789
      %s2800 = smul.u32 22, %s17
      %p2801 = scmp.lt.s32.totalorder %s2800, 43
      %s2802 = scalar_select %p2801, %s2800, 43
      %s2803 = smul.addr %s2802, 8
      %s2804 = scalar_lea.vmem %s6, %s2803
      // Predicated region
      $region45: #{tpu_custom_call.1} parent=43 // pred_check
        %p2805 = pneg %p166
      $region46: #{tpu_custom_call.1} parent=43 // pred_check_branch
        %2807 = sbr.rel (%p2805) target = $region48
      $region47: #{tpu_custom_call.1} parent=43 // pred_region
        %s2808 = smul.u32 22, %s17
      $region48: #{tpu_custom_call.1} parent=43 // pred_fallthru
        _
    $region44: #{tpu_custom_call.1} parent=5 // pred_fallthru
      _
    %p2809 = scmp.le.s32.totalorder 2, %s12
    // Predicated region
    $region49: #{tpu_custom_call.1} parent=5 // pred_check
      %p2810 = pneg %p2809
    $region50: #{tpu_custom_call.1} parent=5 // pred_check_branch
      %2812 = sbr.rel (%p2810) target = $region52
    $region51: #{tpu_custom_call.1} parent=5 // pred_region
      %s2813 = ssub.s32 %s12, 2
      // Predicated region
      $region53: #{tpu_custom_call.1} parent=51 // pred_check
        %p2814 = pneg %p172
      $region54: #{tpu_custom_call.1} parent=51 // pred_check_branch
        %2816 = sbr.rel (%p2814) target = $region56
      $region55: #{tpu_custom_call.1} parent=51 // pred_region
        %s2817 = smul.u32 22, %s18
        %p2818 = scmp.lt.s32.totalorder %s2817, 43
        %s2819 = scalar_select %p2818, %s2817, 43
        %s2820 = smul.addr %s2819, 8
        %s2821 = scalar_lea.vmem %s6, %s2820
      $region56: #{tpu_custom_call.1} parent=51 // pred_fallthru
        _
    $region52: #{tpu_custom_call.1} parent=5 // pred_fallthru
      _
  $region6: #{tpu_custom_call.1} parent=0 // loop_footer
    %s16 = sadd.s32 1, %s12
  $region7: #{tpu_custom_call.1} parent=0 // loop_footer_branch
    %11 = sbr.rel target = $region3
  $region8: #{tpu_custom_call.1} parent=0 // loop_exit
    _

</llo_original>
